<compile_context>
chip_gen: v6e
topology: v6e:2x2x1
jax: 0.10.0
libtpu: 0.0.40
codegen_flags: <defaults>
</compile_context>

<pallas_src>
import functools

import jax
import jax.numpy as jnp
from jax.experimental import pallas as pl
from jax.experimental.pallas import tpu as pltpu


def _light_attention_kernel(maps_ref, hid_ref, wm_ref, bm_ref, wr_ref, br_ref,
                            wf_ref, bf_ref, out_ref, smax_ref, *, bb, mxu_dtype):
    cast = (lambda x: x.astype(mxu_dtype)) if mxu_dtype is not None else (lambda x: x)

    # Weights/biases: resident VMEM blocks (constant index map across the grid).
    wm = cast(wm_ref[...])      # (M, H)
    bm = bm_ref[...]            # (1, H)
    wr = wr_ref[...]            # (1, H)  rectified_linear weight, used as a vector
    br = br_ref[0]              # scalar rectified_linear bias, from SMEM
    wf = cast(wf_ref[...])      # (M, H)
    bf = bf_ref[...]            # (1, H)

    def body(i, carry):
        maps_i = maps_ref[i]            # (P, M)
        hid_i = hid_ref[i]              # (Tt, H)
        maps_mxu = cast(maps_i)

        # map_linear: (P, H)   [MXU]
        map_lin = jnp.dot(maps_mxu, wm, preferred_element_type=jnp.float32) + bm

        # broadcast add + ReLU: only a (Tt, P, H) slab is ever live.
        rect = jnp.maximum(map_lin[None, :, :] + hid_i[:, None, :], 0.0)

        # rectified_linear (out_features=1) as VPU multiply + XLU lane reduce.
        scores = jnp.sum(rect * wr, axis=-1) + br          # (Tt, P)

        # softmax over the pixel axis P
        m = jnp.max(scores, axis=-1, keepdims=True)
        e = jnp.exp(scores - m)                            # (Tt, P)
        l = jnp.sum(e, axis=-1, keepdims=True)             # (Tt, 1)

        # attention path: normalize AFTER the matmul, with exact division so the
        # approx-reciprocal error never reaches `out`.
        att = jnp.dot(cast(e), maps_mxu, preferred_element_type=jnp.float32) / l  # (Tt, M)
        out = jnp.dot(cast(att), wf, preferred_element_type=jnp.float32) + bf + hid_i

        # smax output: approx reciprocal is fine here (EUP slot, ~1e-3 error).
        sm = e * pl.reciprocal(l, approx=True)

        out_ref[i] = out.astype(out_ref.dtype)
        smax_ref[i] = sm.astype(smax_ref.dtype)
        return carry

    jax.lax.fori_loop(0, bb, body, 0)


def _vmem_capacity_bytes():
    """Per-generation VMEM capacity; conservative (v7x) fallback if unknown."""
    try:
        return int(pltpu.get_tpu_info().vmem_capacity_bytes)
    except Exception:
        return 64 * 1024 * 1024


def _pick_t_tile(T, max_tile=256):
    """Largest token tile <= max_tile that divides T (multiple of 8 if < T)."""
    if T <= max_tile:
        return T
    for tt in range(max_tile, 7, -8):
        if T % tt == 0:
            return tt
    # TODO(synk): no multiple-of-8 divisor <= max_tile; fall back to untiled T.
    return T


def _pick_block_batch(batch, nt, per_batch_bytes, fixed_bytes, budget, max_bb=16):
    """Largest bb that fits the VMEM budget; keep >=2 (ideally even) grid steps
    on the parallel axes when T is not tiled (v7x megacore)."""
    cands = [bb for bb in range(1, min(batch, max_bb) + 1)
             if batch % bb == 0 and fixed_bytes + 2 * bb * per_batch_bytes <= budget]
    if not cands:
        return 1
    if nt == 1 and batch > 1:
        even = [bb for bb in cands if (batch // bb) >= 2 and (batch // bb) % 2 == 0]
        if even:
            return max(even)
        ge2 = [bb for bb in cands if (batch // bb) >= 2]
        if ge2:
            return max(ge2)
    return max(cands)


def light_attention(maps, hiddens, params, *, block_batch=None, t_tile=None,
                    mxu_dtype=None, smax_dtype=jnp.float32):
    """maps: (B, x, y, M) channel-last; hiddens: (B, T, H).

    mxu_dtype=jnp.bfloat16 feeds bf16 operands to the MXU matmuls (recommended
    for v6e/v7x at production sizes); smax_dtype=jnp.bfloat16 halves the
    largest output's HBM writeback.  Defaults keep full f32 accuracy.
    """
    B, X, Y, M = maps.shape
    _, T, H = hiddens.shape
    P = X * Y
    flat_maps = maps.reshape(B, P, M)

    tt = _pick_t_tile(T) if t_tile is None else t_tile
    assert T % tt == 0, "t_tile must divide n_tokens"
    nt = T // tt

    # --- explicit VMEM budgeting (re-derived per generation) ---------------
    cap = _vmem_capacity_bytes()
    budget = (3 * cap) // 4
    smax_isize = jnp.dtype(smax_dtype).itemsize
    weights_bytes = (2 * M * H + 3 * H) * 4
    slab_bytes = 2 * tt * P * H * 4                       # rect slab + temporaries
    per_batch_bytes = P * M * 4 + 2 * tt * H * 4 + tt * P * smax_isize

    bb = (_pick_block_batch(B, nt, per_batch_bytes, weights_bytes + slab_bytes,
                            budget)
          if block_batch is None else block_batch)
    assert B % bb == 0, "block_batch must divide the batch size"
    nb = B // bb

    need = weights_bytes + slab_bytes + 2 * bb * per_batch_bytes
    vmem_limit = int(min(cap * 9 // 10, max(2 * need, 32 * 1024 * 1024)))

    # --- parameters ---------------------------------------------------------
    wm = params["map_linear_w"].T            # (M, H)
    bm = params["map_linear_b"][None, :]     # (1, H)
    wr = params["rect_linear_w"]             # (1, H) -- used as a VPU vector
    br = params["rect_linear_b"]             # (1,)   -- scalar, lives in SMEM
    wf = params["final_linear_w"].T          # (M, H)
    bf = params["final_linear_b"][None, :]   # (1, H)

    kernel = functools.partial(_light_attention_kernel, bb=bb, mxu_dtype=mxu_dtype)

    def run(single_buffer_weights):
        wkw = ({"pipeline_mode": pl.Buffered(1)} if single_buffer_weights else {})
        const = lambda shape: pl.BlockSpec(
            shape, lambda b, t: (0,) * len(shape), **wkw)
        return pl.pallas_call(
            kernel,
            out_shape=(
                jax.ShapeDtypeStruct((B, T, H), hiddens.dtype),
                jax.ShapeDtypeStruct((B, T, P), smax_dtype),
            ),
            grid=(nb, nt),
            in_specs=[
                pl.BlockSpec((bb, P, M), lambda b, t: (b, 0, 0)),   # maps (reused over t)
                pl.BlockSpec((bb, tt, H), lambda b, t: (b, t, 0)),  # hiddens tile
                const((M, H)),                                      # map_linear W
                const((1, H)),                                      # map_linear b
                const((1, H)),                                      # rect_linear W
                pl.BlockSpec(memory_space=pltpu.SMEM),              # rect_linear b
                const((M, H)),                                      # final_linear W
                const((1, H)),                                      # final_linear b
            ],
            out_specs=(
                pl.BlockSpec((bb, tt, H), lambda b, t: (b, t, 0)),
                pl.BlockSpec((bb, tt, P), lambda b, t: (b, t, 0)),
            ),
            compiler_params=pltpu.CompilerParams(
                dimension_semantics=("parallel", "parallel"),
                vmem_limit_bytes=vmem_limit,
            ),
        )(flat_maps, hiddens, wm, bm, wr, br, wf, bf)

    try:
        return run(True)
    except Exception:
        # TODO(synk): pl.Buffered(1) (single-buffered resident weights) is not
        # supported on this jax version; fall back to default double-buffering.
        return run(False)


def light_attention_ref(maps, hiddens, params):
    """Pure-JAX reference mirroring the PyTorch forward (HIGHEST-precision matmuls)."""
    prec = jax.lax.Precision.HIGHEST
    B = maps.shape[0]
    M = maps.shape[-1]
    flat = maps.reshape(B, -1, M)                                        # (B,P,M)
    map_lin = jnp.einsum("bpm,hm->bph", flat, params["map_linear_w"],
                         precision=prec) + params["map_linear_b"]
    psum = map_lin[:, None, :, :] + hiddens[:, :, None, :]               # (B,T,P,H)
    rect = jnp.maximum(psum, 0.0)
    scores = jnp.einsum("btph,oh->btpo", rect, params["rect_linear_w"],
                        precision=prec)[..., 0] + params["rect_linear_b"]
    sm = jax.nn.softmax(scores, axis=2)                                  # (B,T,P)
    mul = jnp.einsum("btp,bpm->btm", sm, flat, precision=prec)           # (B,T,M)
    out = jnp.einsum("btm,hm->bth", mul, params["final_linear_w"],
                     precision=prec) + params["final_linear_b"]
    return out + hiddens, sm


def init_params(key, map_dim, hidden_dim):
    """Deterministic init mimicking PyTorch nn.Linear defaults;
    final_linear.weight is zeroed as in the module's __init__."""
    ks = jax.random.split(key, 6)
    def u(k, shape, fan_in):
        lim = 1.0 / jnp.sqrt(fan_in)
        return jax.random.uniform(k, shape, jnp.float32, -lim, lim)
    return {
        "map_linear_w": u(ks[0], (hidden_dim, map_dim), map_dim),
        "map_linear_b": u(ks[1], (hidden_dim,), map_dim),
        "rect_linear_w": u(ks[2], (1, hidden_dim), hidden_dim),
        "rect_linear_b": u(ks[3], (1,), hidden_dim),
        "final_linear_w": jnp.zeros((hidden_dim, map_dim), jnp.float32),
        "final_linear_b": u(ks[5], (hidden_dim,), map_dim),
    }


if __name__ == "__main__":
    B, X, Y, M = 2, 4, 4, 4     # batch, spatial x, spatial y, map_dim
    T, H = 8, 32                # n_tokens, hidden_dim

    key = jax.random.PRNGKey(0)
    k_maps, k_hid, k_par, k_fw = jax.random.split(key, 4)
    maps = jax.random.normal(k_maps, (B, X, Y, M), jnp.float32)
    hiddens = jax.random.normal(k_hid, (B, T, H), jnp.float32)
    params = init_params(k_par, M, H)
    # The module zero-inits final_linear.weight, which would make the out-check
    # independent of the attention path; use a nonzero weight so the softmax
    # and both MXU matmuls are actually validated.
    params["final_linear_w"] = jax.random.uniform(
        k_fw, (H, M), jnp.float32, -0.5, 0.5)

    out, smax = jax.block_until_ready(light_attention(maps, hiddens, params))
    out_ref, smax_ref = light_attention_ref(maps, hiddens, params)

    assert out.shape == (B, T, H) and smax.shape == (B, T, X * Y)
    # Tolerances account for MXU f32 matmul rounding inside the kernel vs. the
    # HIGHEST-precision reference, and (for smax) the EUP approximate reciprocal.
    assert jnp.allclose(out, out_ref, atol=2e-3, rtol=2e-3)
    assert jnp.allclose(smax, smax_ref, atol=2e-3, rtol=2e-3)
    print("KERNEL_OK")
</pallas_src>

<mosaic_0001>
module attributes {stable_mosaic.version = 11 : i64} {
  func.func @_light_attention_kernel(%arg0: i32, %arg1: i32, %arg2: memref<1x16x4xf32, #tpu.memory_space<vmem>>, %arg3: memref<1x8x32xf32, #tpu.memory_space<vmem>>, %arg4: memref<4x32xf32, #tpu.memory_space<vmem>>, %arg5: memref<1x32xf32, #tpu.memory_space<vmem>>, %arg6: memref<1x32xf32, #tpu.memory_space<vmem>>, %arg7: memref<1xf32, #tpu.memory_space<smem>>, %arg8: memref<4x32xf32, #tpu.memory_space<vmem>>, %arg9: memref<1x32xf32, #tpu.memory_space<vmem>>, %arg10: memref<1x8x32xf32, #tpu.memory_space<vmem>>, %arg11: memref<1x8x16xf32, #tpu.memory_space<vmem>>) attributes {dimension_semantics = [#tpu.dimension_semantics<parallel>, #tpu.dimension_semantics<parallel>], iteration_bounds = array<i64: 2, 1>, scalar_prefetch = 0 : i64, scratch_operands = 0 : i64, tpu.core_type = #tpu.core_type<tc>, window_params = [{transform_indices = @transform_0, window_bounds = array<i64: 1, 16, 4>}, {transform_indices = @transform_1, window_bounds = array<i64: 1, 8, 32>}, {pipeline_mode = #tpu.pipeline_mode<synchronous>, transform_indices = @transform_2, window_bounds = array<i64: 4, 32>}, {pipeline_mode = #tpu.pipeline_mode<synchronous>, transform_indices = @transform_3, window_bounds = array<i64: 1, 32>}, {pipeline_mode = #tpu.pipeline_mode<synchronous>, transform_indices = @transform_4, window_bounds = array<i64: 1, 32>}, {transform_indices = @transform_5, window_bounds = array<i64: 1>}, {pipeline_mode = #tpu.pipeline_mode<synchronous>, transform_indices = @transform_6, window_bounds = array<i64: 4, 32>}, {pipeline_mode = #tpu.pipeline_mode<synchronous>, transform_indices = @transform_7, window_bounds = array<i64: 1, 32>}, {transform_indices = @transform_8, window_bounds = array<i64: 1, 8, 32>}, {transform_indices = @transform_9, window_bounds = array<i64: 1, 8, 16>}]} {
    %c0 = arith.constant 0 : index
    %c0_0 = arith.constant 0 : index
    %0 = vector.load %arg4[%c0, %c0_0] : memref<4x32xf32, #tpu.memory_space<vmem>>, vector<4x32xf32>
    %c0_1 = arith.constant 0 : index
    %c0_2 = arith.constant 0 : index
    %1 = vector.load %arg5[%c0_1, %c0_2] : memref<1x32xf32, #tpu.memory_space<vmem>>, vector<1x32xf32>
    %c0_3 = arith.constant 0 : index
    %c0_4 = arith.constant 0 : index
    %2 = vector.load %arg6[%c0_3, %c0_4] : memref<1x32xf32, #tpu.memory_space<vmem>>, vector<1x32xf32>
    %c0_5 = arith.constant 0 : index
    %3 = memref.load %arg7[%c0_5] : memref<1xf32, #tpu.memory_space<smem>>
    %c0_6 = arith.constant 0 : index
    %c0_7 = arith.constant 0 : index
    %4 = vector.load %arg8[%c0_6, %c0_7] : memref<4x32xf32, #tpu.memory_space<vmem>>, vector<4x32xf32>
    %c0_8 = arith.constant 0 : index
    %c0_9 = arith.constant 0 : index
    %5 = vector.load %arg9[%c0_8, %c0_9] : memref<1x32xf32, #tpu.memory_space<vmem>>, vector<1x32xf32>
    %c0_i32 = arith.constant 0 : i32
    %6 = arith.index_cast %c0_i32 : i32 to index
    %c0_10 = arith.constant 0 : index
    %c0_11 = arith.constant 0 : index
    %7 = vector.load %arg2[%6, %c0_10, %c0_11] : memref<1x16x4xf32, #tpu.memory_space<vmem>>, vector<1x16x4xf32>
    %8 = vector.shape_cast %7 : vector<1x16x4xf32> to vector<16x4xf32>
    %9 = arith.index_cast %c0_i32 : i32 to index
    %c0_12 = arith.constant 0 : index
    %c0_13 = arith.constant 0 : index
    %10 = vector.load %arg3[%9, %c0_12, %c0_13] : memref<1x8x32xf32, #tpu.memory_space<vmem>>, vector<1x8x32xf32>
    %11 = vector.shape_cast %10 : vector<1x8x32xf32> to vector<8x32xf32>
    %cst = arith.constant dense<0.000000e+00> : vector<16x32xf32>
    %12 = tpu.matmul %8, %0, %cst {dimension_numbers = #tpu.dot_dimension_numbers<[1], [0], [0], [1], [0, 0, 1, 1], [], []>} : vector<16x4xf32>, vector<4x32xf32>, vector<16x32xf32> -> vector<16x32xf32>
    %13 = vector.broadcast %1 : vector<1x32xf32> to vector<16x32xf32>
    %14 = arith.addf %12, %13 : vector<16x32xf32>
    %15 = vector.shape_cast %14 : vector<16x32xf32> to vector<1x16x32xf32>
    %16 = vector.shape_cast %11 : vector<8x32xf32> to vector<8x1x32xf32>
    %17 = vector.broadcast %15 : vector<1x16x32xf32> to vector<8x16x32xf32>
    %18 = vector.broadcast %16 : vector<8x1x32xf32> to vector<8x16x32xf32>
    %19 = arith.addf %17, %18 : vector<8x16x32xf32>
    %cst_14 = arith.constant 0.000000e+00 : f32
    %20 = vector.broadcast %cst_14 : f32 to vector<8x16x32xf32>
    %21 = arith.maximumf %19, %20 : vector<8x16x32xf32>
    %22 = vector.shape_cast %2 : vector<1x32xf32> to vector<1x1x32xf32>
    %23 = vector.broadcast %22 : vector<1x1x32xf32> to vector<8x16x32xf32>
    %24 = arith.mulf %21, %23 : vector<8x16x32xf32>
    %cst_15 = arith.constant dense<0.000000e+00> : vector<8x16xf32>
    %25 = vector.multi_reduction <add>, %24, %cst_15 [2] : vector<8x16x32xf32> to vector<8x16xf32>
    %26 = vector.broadcast %3 : f32 to vector<8x16xf32>
    %27 = arith.addf %25, %26 : vector<8x16xf32>
    %cst_16 = arith.constant dense<0xFF800000> : vector<8xf32>
    %28 = vector.multi_reduction <maximumf>, %27, %cst_16 [1] : vector<8x16xf32> to vector<8xf32>
    %29 = vector.shape_cast %28 : vector<8xf32> to vector<8x1xf32>
    %30 = vector.broadcast %29 : vector<8x1xf32> to vector<8x16xf32>
    %31 = arith.subf %27, %30 : vector<8x16xf32>
    %32 = math.exp %31 : vector<8x16xf32>
    %cst_17 = arith.constant dense<0.000000e+00> : vector<8xf32>
    %33 = vector.multi_reduction <add>, %32, %cst_17 [1] : vector<8x16xf32> to vector<8xf32>
    %34 = vector.shape_cast %33 : vector<8xf32> to vector<8x1xf32>
    %cst_18 = arith.constant dense<0.000000e+00> : vector<8x4xf32>
    %35 = tpu.matmul %32, %8, %cst_18 {dimension_numbers = #tpu.dot_dimension_numbers<[1], [0], [0], [1], [0, 0, 1, 1], [], []>} : vector<8x16xf32>, vector<16x4xf32>, vector<8x4xf32> -> vector<8x4xf32>
    %36 = vector.broadcast %34 : vector<8x1xf32> to vector<8x4xf32>
    %37 = arith.divf %35, %36 : vector<8x4xf32>
    %cst_19 = arith.constant dense<0.000000e+00> : vector<8x32xf32>
    %38 = tpu.matmul %37, %4, %cst_19 {dimension_numbers = #tpu.dot_dimension_numbers<[1], [0], [0], [1], [0, 0, 1, 1], [], []>} : vector<8x4xf32>, vector<4x32xf32>, vector<8x32xf32> -> vector<8x32xf32>
    %39 = vector.broadcast %5 : vector<1x32xf32> to vector<8x32xf32>
    %40 = arith.addf %38, %39 : vector<8x32xf32>
    %41 = arith.addf %40, %11 : vector<8x32xf32>
    %42 = tpu.reciprocal %34 {approx = true} : vector<8x1xf32> -> vector<8x1xf32>
    %43 = vector.broadcast %42 : vector<8x1xf32> to vector<8x16xf32>
    %44 = arith.mulf %32, %43 : vector<8x16xf32>
    %45 = arith.index_cast %c0_i32 : i32 to index
    %c0_20 = arith.constant 0 : index
    %c0_21 = arith.constant 0 : index
    %46 = vector.load %arg10[%45, %c0_20, %c0_21] : memref<1x8x32xf32, #tpu.memory_space<vmem>>, vector<1x8x32xf32>
    %47 = vector.shape_cast %46 : vector<1x8x32xf32> to vector<8x32xf32>
    %48 = vector.shape_cast %41 : vector<8x32xf32> to vector<1x8x32xf32>
    tpu.vector_store %arg10[%45, %c0_20, %c0_21], %48 {strides = array<i32>} : memref<1x8x32xf32, #tpu.memory_space<vmem>>, vector<1x8x32xf32>,
    %49 = arith.index_cast %c0_i32 : i32 to index
    %c0_22 = arith.constant 0 : index
    %c0_23 = arith.constant 0 : index
    %50 = vector.load %arg11[%49, %c0_22, %c0_23] : memref<1x8x16xf32, #tpu.memory_space<vmem>>, vector<1x8x16xf32>
    %51 = vector.shape_cast %50 : vector<1x8x16xf32> to vector<8x16xf32>
    %52 = vector.shape_cast %44 : vector<8x16xf32> to vector<1x8x16xf32>
    tpu.vector_store %arg11[%49, %c0_22, %c0_23], %52 {strides = array<i32>} : memref<1x8x16xf32, #tpu.memory_space<vmem>>, vector<1x8x16xf32>,
    %c1_i32 = arith.constant 1 : i32
    return
  }
  func.func @transform_0(%arg0: i32, %arg1: i32) -> (i32, i32, i32) {
    %c0_i32 = arith.constant 0 : i32
    %c0_i32_0 = arith.constant 0 : i32
    %c0_i32_1 = arith.constant 0 : i32
    return %arg0, %c0_i32, %c0_i32_0 : i32, i32, i32
  }
  func.func @transform_1(%arg0: i32, %arg1: i32) -> (i32, i32, i32) {
    %c0_i32 = arith.constant 0 : i32
    %c0_i32_0 = arith.constant 0 : i32
    return %arg0, %arg1, %c0_i32 : i32, i32, i32
  }
  func.func @transform_2(%arg0: i32, %arg1: i32) -> (i32, i32) {
    %c0_i32 = arith.constant 0 : i32
    %c0_i32_0 = arith.constant 0 : i32
    %c0_i32_1 = arith.constant 0 : i32
    return %c0_i32, %c0_i32_0 : i32, i32
  }
  func.func @transform_3(%arg0: i32, %arg1: i32) -> (i32, i32) {
    %c0_i32 = arith.constant 0 : i32
    %c0_i32_0 = arith.constant 0 : i32
    %c0_i32_1 = arith.constant 0 : i32
    return %c0_i32, %c0_i32_0 : i32, i32
  }
  func.func @transform_4(%arg0: i32, %arg1: i32) -> (i32, i32) {
    %c0_i32 = arith.constant 0 : i32
    %c0_i32_0 = arith.constant 0 : i32
    %c0_i32_1 = arith.constant 0 : i32
    return %c0_i32, %c0_i32_0 : i32, i32
  }
  func.func @transform_5(%arg0: i32, %arg1: i32) -> i32 {
    %c0_i32 = arith.constant 0 : i32
    %c0_i32_0 = arith.constant 0 : i32
    return %c0_i32 : i32
  }
  func.func @transform_6(%arg0: i32, %arg1: i32) -> (i32, i32) {
    %c0_i32 = arith.constant 0 : i32
    %c0_i32_0 = arith.constant 0 : i32
    %c0_i32_1 = arith.constant 0 : i32
    return %c0_i32, %c0_i32_0 : i32, i32
  }
  func.func @transform_7(%arg0: i32, %arg1: i32) -> (i32, i32) {
    %c0_i32 = arith.constant 0 : i32
    %c0_i32_0 = arith.constant 0 : i32
    %c0_i32_1 = arith.constant 0 : i32
    return %c0_i32, %c0_i32_0 : i32, i32
  }
  func.func @transform_8(%arg0: i32, %arg1: i32) -> (i32, i32, i32) {
    %c0_i32 = arith.constant 0 : i32
    %c0_i32_0 = arith.constant 0 : i32
    return %arg0, %arg1, %c0_i32 : i32, i32, i32
  }
  func.func @transform_9(%arg0: i32, %arg1: i32) -> (i32, i32, i32) {
    %c0_i32 = arith.constant 0 : i32
    %c0_i32_0 = arith.constant 0 : i32
    return %arg0, %arg1, %c0_i32 : i32, i32, i32
  }
}

module attributes {stable_mosaic.version = 11 : i64} {
  func.func @_light_attention_kernel(%arg0: i32, %arg1: i32, %arg2: memref<1x16x4xf32, #tpu.memory_space<vmem>>, %arg3: memref<1x8x32xf32, #tpu.memory_space<vmem>>, %arg4: memref<4x32xf32, #tpu.memory_space<vmem>>, %arg5: memref<1x32xf32, #tpu.memory_space<vmem>>, %arg6: memref<1x32xf32, #tpu.memory_space<vmem>>, %arg7: memref<1xf32, #tpu.memory_space<smem>>, %arg8: memref<4x32xf32, #tpu.memory_space<vmem>>, %arg9: memref<1x32xf32, #tpu.memory_space<vmem>>, %arg10: memref<1x8x32xf32, #tpu.memory_space<vmem>>, %arg11: memref<1x8x16xf32, #tpu.memory_space<vmem>>) attributes {dimension_semantics = [#tpu.dimension_semantics<parallel>, #tpu.dimension_semantics<parallel>], iteration_bounds = array<i64: 2, 1>, scalar_prefetch = 0 : i64, scratch_operands = 0 : i64, tpu.core_type = #tpu.core_type<tc>, window_params = [{transform_indices = @transform_0, window_bounds = array<i64: 1, 16, 4>}, {transform_indices = @transform_1, window_bounds = array<i64: 1, 8, 32>}, {pipeline_mode = #tpu.pipeline_mode<synchronous>, transform_indices = @transform_2, window_bounds = array<i64: 4, 32>}, {pipeline_mode = #tpu.pipeline_mode<synchronous>, transform_indices = @transform_3, window_bounds = array<i64: 1, 32>}, {pipeline_mode = #tpu.pipeline_mode<synchronous>, transform_indices = @transform_4, window_bounds = array<i64: 1, 32>}, {transform_indices = @transform_5, window_bounds = array<i64: 1>}, {pipeline_mode = #tpu.pipeline_mode<synchronous>, transform_indices = @transform_6, window_bounds = array<i64: 4, 32>}, {pipeline_mode = #tpu.pipeline_mode<synchronous>, transform_indices = @transform_7, window_bounds = array<i64: 1, 32>}, {transform_indices = @transform_8, window_bounds = array<i64: 1, 8, 32>}, {transform_indices = @transform_9, window_bounds = array<i64: 1, 8, 16>}]} {
    %c0 = arith.constant 0 : index
    %c0_0 = arith.constant 0 : index
    %0 = vector.load %arg4[%c0, %c0_0] : memref<4x32xf32, #tpu.memory_space<vmem>>, vector<4x32xf32>
    %c0_1 = arith.constant 0 : index
    %c0_2 = arith.constant 0 : index
    %1 = vector.load %arg5[%c0_1, %c0_2] : memref<1x32xf32, #tpu.memory_space<vmem>>, vector<1x32xf32>
    %c0_3 = arith.constant 0 : index
    %c0_4 = arith.constant 0 : index
    %2 = vector.load %arg6[%c0_3, %c0_4] : memref<1x32xf32, #tpu.memory_space<vmem>>, vector<1x32xf32>
    %c0_5 = arith.constant 0 : index
    %3 = memref.load %arg7[%c0_5] : memref<1xf32, #tpu.memory_space<smem>>
    %c0_6 = arith.constant 0 : index
    %c0_7 = arith.constant 0 : index
    %4 = vector.load %arg8[%c0_6, %c0_7] : memref<4x32xf32, #tpu.memory_space<vmem>>, vector<4x32xf32>
    %c0_8 = arith.constant 0 : index
    %c0_9 = arith.constant 0 : index
    %5 = vector.load %arg9[%c0_8, %c0_9] : memref<1x32xf32, #tpu.memory_space<vmem>>, vector<1x32xf32>
    %c0_i32 = arith.constant 0 : i32
    %6 = arith.index_cast %c0_i32 : i32 to index
    %c0_10 = arith.constant 0 : index
    %c0_11 = arith.constant 0 : index
    %7 = vector.load %arg2[%6, %c0_10, %c0_11] : memref<1x16x4xf32, #tpu.memory_space<vmem>>, vector<1x16x4xf32>
    %8 = vector.shape_cast %7 : vector<1x16x4xf32> to vector<16x4xf32>
    %9 = arith.index_cast %c0_i32 : i32 to index
    %c0_12 = arith.constant 0 : index
    %c0_13 = arith.constant 0 : index
    %10 = vector.load %arg3[%9, %c0_12, %c0_13] : memref<1x8x32xf32, #tpu.memory_space<vmem>>, vector<1x8x32xf32>
    %11 = vector.shape_cast %10 : vector<1x8x32xf32> to vector<8x32xf32>
    %cst = arith.constant dense<0.000000e+00> : vector<16x32xf32>
    %12 = tpu.matmul %8, %0, %cst {dimension_numbers = #tpu.dot_dimension_numbers<[1], [0], [0], [1], [0, 0, 1, 1], [], []>} : vector<16x4xf32>, vector<4x32xf32>, vector<16x32xf32> -> vector<16x32xf32>
    %13 = vector.broadcast %1 : vector<1x32xf32> to vector<16x32xf32>
    %14 = arith.addf %12, %13 : vector<16x32xf32>
    %15 = vector.shape_cast %14 : vector<16x32xf32> to vector<1x16x32xf32>
    %16 = vector.shape_cast %11 : vector<8x32xf32> to vector<8x1x32xf32>
    %17 = vector.broadcast %15 : vector<1x16x32xf32> to vector<8x16x32xf32>
    %18 = vector.broadcast %16 : vector<8x1x32xf32> to vector<8x16x32xf32>
    %19 = arith.addf %17, %18 : vector<8x16x32xf32>
    %cst_14 = arith.constant 0.000000e+00 : f32
    %20 = vector.broadcast %cst_14 : f32 to vector<8x16x32xf32>
    %21 = arith.maximumf %19, %20 : vector<8x16x32xf32>
    %22 = vector.shape_cast %2 : vector<1x32xf32> to vector<1x1x32xf32>
    %23 = vector.broadcast %22 : vector<1x1x32xf32> to vector<8x16x32xf32>
    %24 = arith.mulf %21, %23 : vector<8x16x32xf32>
    %cst_15 = arith.constant dense<0.000000e+00> : vector<8x16xf32>
    %25 = vector.multi_reduction <add>, %24, %cst_15 [2] : vector<8x16x32xf32> to vector<8x16xf32>
    %26 = vector.broadcast %3 : f32 to vector<8x16xf32>
    %27 = arith.addf %25, %26 : vector<8x16xf32>
    %cst_16 = arith.constant dense<0xFF800000> : vector<8xf32>
    %28 = vector.multi_reduction <maximumf>, %27, %cst_16 [1] : vector<8x16xf32> to vector<8xf32>
    %29 = vector.shape_cast %28 : vector<8xf32> to vector<8x1xf32>
    %30 = vector.broadcast %29 : vector<8x1xf32> to vector<8x16xf32>
    %31 = arith.subf %27, %30 : vector<8x16xf32>
    %32 = math.exp %31 : vector<8x16xf32>
    %cst_17 = arith.constant dense<0.000000e+00> : vector<8xf32>
    %33 = vector.multi_reduction <add>, %32, %cst_17 [1] : vector<8x16xf32> to vector<8xf32>
    %34 = vector.shape_cast %33 : vector<8xf32> to vector<8x1xf32>
    %cst_18 = arith.constant dense<0.000000e+00> : vector<8x4xf32>
    %35 = tpu.matmul %32, %8, %cst_18 {dimension_numbers = #tpu.dot_dimension_numbers<[1], [0], [0], [1], [0, 0, 1, 1], [], []>} : vector<8x16xf32>, vector<16x4xf32>, vector<8x4xf32> -> vector<8x4xf32>
    %36 = vector.broadcast %34 : vector<8x1xf32> to vector<8x4xf32>
    %37 = arith.divf %35, %36 : vector<8x4xf32>
    %cst_19 = arith.constant dense<0.000000e+00> : vector<8x32xf32>
    %38 = tpu.matmul %37, %4, %cst_19 {dimension_numbers = #tpu.dot_dimension_numbers<[1], [0], [0], [1], [0, 0, 1, 1], [], []>} : vector<8x4xf32>, vector<4x32xf32>, vector<8x32xf32> -> vector<8x32xf32>
    %39 = vector.broadcast %5 : vector<1x32xf32> to vector<8x32xf32>
    %40 = arith.addf %38, %39 : vector<8x32xf32>
    %41 = arith.addf %40, %11 : vector<8x32xf32>
    %42 = tpu.reciprocal %34 {approx = true} : vector<8x1xf32> -> vector<8x1xf32>
    %43 = vector.broadcast %42 : vector<8x1xf32> to vector<8x16xf32>
    %44 = arith.mulf %32, %43 : vector<8x16xf32>
    %45 = arith.index_cast %c0_i32 : i32 to index
    %c0_20 = arith.constant 0 : index
    %c0_21 = arith.constant 0 : index
    %46 = vector.load %arg10[%45, %c0_20, %c0_21] : memref<1x8x32xf32, #tpu.memory_space<vmem>>, vector<1x8x32xf32>
    %47 = vector.shape_cast %46 : vector<1x8x32xf32> to vector<8x32xf32>
    %48 = vector.shape_cast %41 : vector<8x32xf32> to vector<1x8x32xf32>
    tpu.vector_store %arg10[%45, %c0_20, %c0_21], %48 {strides = array<i32>} : memref<1x8x32xf32, #tpu.memory_space<vmem>>, vector<1x8x32xf32>,
    %49 = arith.index_cast %c0_i32 : i32 to index
    %c0_22 = arith.constant 0 : index
    %c0_23 = arith.constant 0 : index
    %50 = vector.load %arg11[%49, %c0_22, %c0_23] : memref<1x8x16xf32, #tpu.memory_space<vmem>>, vector<1x8x16xf32>
    %51 = vector.shape_cast %50 : vector<1x8x16xf32> to vector<8x16xf32>
    %52 = vector.shape_cast %44 : vector<8x16xf32> to vector<1x8x16xf32>
    tpu.vector_store %arg11[%49, %c0_22, %c0_23], %52 {strides = array<i32>} : memref<1x8x16xf32, #tpu.memory_space<vmem>>, vector<1x8x16xf32>,
    %c1_i32 = arith.constant 1 : i32
    return
  }
  func.func @transform_0(%arg0: i32, %arg1: i32) -> (i32, i32, i32) {
    %c0_i32 = arith.constant 0 : i32
    %c0_i32_0 = arith.constant 0 : i32
    %c0_i32_1 = arith.constant 0 : i32
    return %arg0, %c0_i32, %c0_i32_0 : i32, i32, i32
  }
  func.func @transform_1(%arg0: i32, %arg1: i32) -> (i32, i32, i32) {
    %c0_i32 = arith.constant 0 : i32
    %c0_i32_0 = arith.constant 0 : i32
    return %arg0, %arg1, %c0_i32 : i32, i32, i32
  }
  func.func @transform_2(%arg0: i32, %arg1: i32) -> (i32, i32) {
    %c0_i32 = arith.constant 0 : i32
    %c0_i32_0 = arith.constant 0 : i32
    %c0_i32_1 = arith.constant 0 : i32
    return %c0_i32, %c0_i32_0 : i32, i32
  }
  func.func @transform_3(%arg0: i32, %arg1: i32) -> (i32, i32) {
    %c0_i32 = arith.constant 0 : i32
    %c0_i32_0 = arith.constant 0 : i32
    %c0_i32_1 = arith.constant 0 : i32
    return %c0_i32, %c0_i32_0 : i32, i32
  }
  func.func @transform_4(%arg0: i32, %arg1: i32) -> (i32, i32) {
    %c0_i32 = arith.constant 0 : i32
    %c0_i32_0 = arith.constant 0 : i32
    %c0_i32_1 = arith.constant 0 : i32
    return %c0_i32, %c0_i32_0 : i32, i32
  }
  func.func @transform_5(%arg0: i32, %arg1: i32) -> i32 {
    %c0_i32 = arith.constant 0 : i32
    %c0_i32_0 = arith.constant 0 : i32
    return %c0_i32 : i32
  }
  func.func @transform_6(%arg0: i32, %arg1: i32) -> (i32, i32) {
    %c0_i32 = arith.constant 0 : i32
    %c0_i32_0 = arith.constant 0 : i32
    %c0_i32_1 = arith.constant 0 : i32
    return %c0_i32, %c0_i32_0 : i32, i32
  }
  func.func @transform_7(%arg0: i32, %arg1: i32) -> (i32, i32) {
    %c0_i32 = arith.constant 0 : i32
    %c0_i32_0 = arith.constant 0 : i32
    %c0_i32_1 = arith.constant 0 : i32
    return %c0_i32, %c0_i32_0 : i32, i32
  }
  func.func @transform_8(%arg0: i32, %arg1: i32) -> (i32, i32, i32) {
    %c0_i32 = arith.constant 0 : i32
    %c0_i32_0 = arith.constant 0 : i32
    return %arg0, %arg1, %c0_i32 : i32, i32, i32
  }
  func.func @transform_9(%arg0: i32, %arg1: i32) -> (i32, i32, i32) {
    %c0_i32 = arith.constant 0 : i32
    %c0_i32_0 = arith.constant 0 : i32
    return %arg0, %arg1, %c0_i32 : i32, i32, i32
  }
}

</mosaic_0001>

<llo_original>
// kernel: tpu_custom_call.1
$region0: #{tpu_custom_call.1}
  #allocation0 [shape = 'u32[]', space=smem, size = 0x4, offset = 0x4, fixed_abs, tag = 'smem constant byte address 0x4 - core index']
  #allocation1 [shape = 'u32[144,128]{1,0:T(1,128)}', space=vmem, size = 0x12000, scoped, tag = 'internal scratch']
  #allocation2 [shape = 'f32[1]{0:T(128)S(6)}', space=smem, size = 0x200, scoped, tag = 'scoped memory for tpu_custom_call.1']
  %s0 = inlined_call_operand.vmem [shape: f32[2,16,4], index: 0, kind: input, shape index: {}]
  %s1 = inlined_call_operand.vmem [shape: f32[2,8,32], index: 1, kind: input, shape index: {}]
  %s2 = inlined_call_operand.vmem [shape: f32[4,32], index: 2, kind: input, shape index: {}]
  %s3 = inlined_call_operand.vmem [shape: f32[1,32], index: 3, kind: input, shape index: {}]
  %s4 = inlined_call_operand.vmem [shape: f32[1,32], index: 4, kind: input, shape index: {}]
  %s5 = inlined_call_operand.<no memory space> [shape: f32[1], index: 5, kind: input, shape index: {}]
  %s6 = inlined_call_operand.vmem [shape: f32[4,32], index: 6, kind: input, shape index: {}]
  %s7 = inlined_call_operand.vmem [shape: f32[1,32], index: 7, kind: input, shape index: {}]
  %s8 = inlined_call_operand.hbm [shape: f32[2,8,32], index: 8, kind: output, shape index: {0}]
  %s9 = inlined_call_operand.hbm [shape: f32[2,8,16], index: 9, kind: output, shape index: {1}]
  %10 = xla_tuple %s8, %s9
  %s11 = sld [smem:[#allocation0]]
  $region73: #{tpu_custom_call.1} parent=0
    _
  %s13 = ssub.s32 1, %s11
  %s14 = scalar_select 0, %s13, %s11
  %15 = sst [smem:[#allocation2]] %s5
  $region1: #{tpu_custom_call.1} parent=0
    #allocation3 [shape = 'u8[8192]{0}', space=vmem, size = 0x2000, scoped, tag = 'output window, operand 0']
    #allocation4 [shape = 's32[2]{0}', space=sflag, size = 0x8, scoped, tag = 'scoped memory for tpu_custom_call.1']
    #allocation5 [shape = 'u8[8192]{0}', space=vmem, size = 0x2000, scoped, tag = 'output window, operand 1']
    #allocation6 [shape = 's32[2]{0}', space=sflag, size = 0x8, scoped, tag = 'scoped memory for tpu_custom_call.1']
    %16 = vsyncpa [#allocation4], 0
    %s17 = scalar_lea.sflag [#allocation4], 1
    %18 = vsyncpa %s17, 0
    %19 = vsyncpa [#allocation6], 0
    %s20 = scalar_lea.sflag [#allocation6], 1
    %21 = vsyncpa %s20, 0
    loop: start=0, step=1, limit=4
    $region2: #{tpu_custom_call.1} parent=1 // loop_pre_header
      _
    $region3: #{tpu_custom_call.1} parent=1 // loop_header
      %s23 = sphi 0, %s27
      %p24 = scmp.ge.s32.totalorder %s23, 4
      %s30 = sphi 0, %s42
      %s31 = sphi 0, %s38
      %s32 = sphi 0, %s30
      %s33 = sphi 0, %s31
      %s34 = sphi 0, %s32
      %s35 = sphi 0, %s33
      %s45 = sphi 0, %s47
      %s48 = sphi 0, %s45
      %s49 = sphi 0, %s48
      %s65 = sphi 0, %s49
      %s73 = sphi 0, %s75
      %s76 = sphi 0, %s73
      %s77 = sphi 0, %s76
      %s93 = sphi 0, %s77
      %s97 = sphi 0, %s97
      %s99 = sphi 0, %s97
      %s100 = sphi 0, %s99
      %s114 = sphi 0, %s100
      %s118 = sphi 0, %s118
      %s120 = sphi 0, %s118
      %s121 = sphi 0, %s120
      %s135 = sphi 0, %s121
      %s139 = sphi 0, %s139
      %s141 = sphi 0, %s139
      %s142 = sphi 0, %s141
      %s156 = sphi 0, %s142
      %s160 = sphi 0, %s160
      %s162 = sphi 0, %s160
      %s163 = sphi 0, %s162
      %s177 = sphi 0, %s163
      %s181 = sphi 0, %s181
      %s183 = sphi 0, %s181
      %s184 = sphi 0, %s183
      %s198 = sphi 0, %s184
      %s202 = sphi 0, %s202
      %s204 = sphi 0, %s202
      %s205 = sphi 0, %s204
      %s219 = sphi 0, %s205
      %s227 = sphi 0, %s229
      %s230 = sphi 0, %s227
      %s231 = sphi 0, %s230
      %s247 = sphi 0, %s231
      %s255 = sphi 0, %s257
      %s258 = sphi 0, %s255
      %s259 = sphi 0, %s258
      %s275 = sphi 0, %s259
    $region4: #{tpu_custom_call.1} parent=1 // loop_header_branch
      %26 = sbr.rel (%p24) target = $region8
    $region5: #{tpu_custom_call.1} parent=1 // loop_body
      %s28 = ssub.s32 %s23, 1
      %s29 = ssub.s32 %s23, 2
      %s36 = sadd.s32 1, %s31
      %p37 = scmp.ge.s32.totalorder %s36, 1
      %s38 = scalar_select %p37, 0, %s36
      %s39 = sadd.s32 1, %s30
      %s40 = scalar_select %p37, %s39, %s30
      %p41 = scmp.ge.s32.totalorder %s40, 2
      %s42 = scalar_select %p41, 0, %s40
      %s43 = ssub.s32 %s30, %s42
      %p44 = scmp.eq.s32.totalorder %s43, 0
      %s46 = sadd.s32 %s45, 1
      %s47 = scalar_select %p44, %s45, %s46
      %p50 = pneg %p44
      %p51 = scmp.eq.s32.totalorder %s23, 1
      %p52 = por %p50, %p51
      %p53 = scmp.ne.s32.totalorder %s45, %s48
      %p54 = scmp.eq.s32.totalorder %s23, 0
      %p55 = por %p53, %p54
      %p56 = scmp.ne.s32.totalorder %s45, %s48
      %p57 = scmp.eq.s32.totalorder %s28, 1
      %p58 = por %p56, %p57
      %p59 = scmp.ne.s32.totalorder %s48, %s49
      %p60 = scmp.eq.s32.totalorder %s28, 0
      %p61 = por %p59, %p60
      %p62 = scmp.ne.s32.totalorder %s48, %s49
      %p63 = scmp.eq.s32.totalorder %s29, 1
      %p64 = por %p62, %p63
      %p66 = scmp.ne.s32.totalorder %s49, %s65
      %p67 = scmp.eq.s32.totalorder %s29, 0
      %p68 = por %p66, %p67
      %s69 = ssub.s32 %s30, %s42
      %s70 = ssub.s32 %s31, %s38
      %s71 = sor.u32 %s69, %s70
      %p72 = scmp.eq.s32.totalorder %s71, 0
      %s74 = sadd.s32 %s73, 1
      %s75 = scalar_select %p72, %s73, %s74
      %p78 = pneg %p72
      %p79 = scmp.eq.s32.totalorder %s23, 1
      %p80 = por %p78, %p79
      %p81 = scmp.ne.s32.totalorder %s73, %s76
      %p82 = scmp.eq.s32.totalorder %s23, 0
      %p83 = por %p81, %p82
      %p84 = scmp.ne.s32.totalorder %s73, %s76
      %p85 = scmp.eq.s32.totalorder %s28, 1
      %p86 = por %p84, %p85
      %p87 = scmp.ne.s32.totalorder %s76, %s77
      %p88 = scmp.eq.s32.totalorder %s28, 0
      %p89 = por %p87, %p88
      %p90 = scmp.ne.s32.totalorder %s76, %s77
      %p91 = scmp.eq.s32.totalorder %s29, 1
      %p92 = por %p90, %p91
      %p94 = scmp.ne.s32.totalorder %s77, %s93
      %p95 = scmp.eq.s32.totalorder %s29, 0
      %p96 = por %p94, %p95
      %s98 = sadd.s32 %s97, 1
      %p101 = scmp.eq.s32.totalorder %s23, 1
      %p102 = scmp.ne.s32.totalorder %s97, %s99
      %p103 = scmp.eq.s32.totalorder %s23, 0
      %p104 = por %p102, %p103
      %p105 = scmp.ne.s32.totalorder %s97, %s99
      %p106 = scmp.eq.s32.totalorder %s28, 1
      %p107 = por %p105, %p106
      %p108 = scmp.ne.s32.totalorder %s99, %s100
      %p109 = scmp.eq.s32.totalorder %s28, 0
      %p110 = por %p108, %p109
      %p111 = scmp.ne.s32.totalorder %s99, %s100
      %p112 = scmp.eq.s32.totalorder %s29, 1
      %p113 = por %p111, %p112
      %p115 = scmp.ne.s32.totalorder %s100, %s114
      %p116 = scmp.eq.s32.totalorder %s29, 0
      %p117 = por %p115, %p116
      %s119 = sadd.s32 %s118, 1
      %p122 = scmp.eq.s32.totalorder %s23, 1
      %p123 = scmp.ne.s32.totalorder %s118, %s120
      %p124 = scmp.eq.s32.totalorder %s23, 0
      %p125 = por %p123, %p124
      %p126 = scmp.ne.s32.totalorder %s118, %s120
      %p127 = scmp.eq.s32.totalorder %s28, 1
      %p128 = por %p126, %p127
      %p129 = scmp.ne.s32.totalorder %s120, %s121
      %p130 = scmp.eq.s32.totalorder %s28, 0
      %p131 = por %p129, %p130
      %p132 = scmp.ne.s32.totalorder %s120, %s121
      %p133 = scmp.eq.s32.totalorder %s29, 1
      %p134 = por %p132, %p133
      %p136 = scmp.ne.s32.totalorder %s121, %s135
      %p137 = scmp.eq.s32.totalorder %s29, 0
      %p138 = por %p136, %p137
      %s140 = sadd.s32 %s139, 1
      %p143 = scmp.eq.s32.totalorder %s23, 1
      %p144 = scmp.ne.s32.totalorder %s139, %s141
      %p145 = scmp.eq.s32.totalorder %s23, 0
      %p146 = por %p144, %p145
      %p147 = scmp.ne.s32.totalorder %s139, %s141
      %p148 = scmp.eq.s32.totalorder %s28, 1
      %p149 = por %p147, %p148
      %p150 = scmp.ne.s32.totalorder %s141, %s142
      %p151 = scmp.eq.s32.totalorder %s28, 0
      %p152 = por %p150, %p151
      %p153 = scmp.ne.s32.totalorder %s141, %s142
      %p154 = scmp.eq.s32.totalorder %s29, 1
      %p155 = por %p153, %p154
      %p157 = scmp.ne.s32.totalorder %s142, %s156
      %p158 = scmp.eq.s32.totalorder %s29, 0
      %p159 = por %p157, %p158
      %s161 = sadd.s32 %s160, 1
      %p164 = scmp.eq.s32.totalorder %s23, 1
      %p165 = scmp.ne.s32.totalorder %s160, %s162
      %p166 = scmp.eq.s32.totalorder %s23, 0
      %p167 = por %p165, %p166
      %p168 = scmp.ne.s32.totalorder %s160, %s162
      %p169 = scmp.eq.s32.totalorder %s28, 1
      %p170 = por %p168, %p169
      %p171 = scmp.ne.s32.totalorder %s162, %s163
      %p172 = scmp.eq.s32.totalorder %s28, 0
      %p173 = por %p171, %p172
      %p174 = scmp.ne.s32.totalorder %s162, %s163
      %p175 = scmp.eq.s32.totalorder %s29, 1
      %p176 = por %p174, %p175
      %p178 = scmp.ne.s32.totalorder %s163, %s177
      %p179 = scmp.eq.s32.totalorder %s29, 0
      %p180 = por %p178, %p179
      %s182 = sadd.s32 %s181, 1
      %p185 = scmp.eq.s32.totalorder %s23, 1
      %p186 = scmp.ne.s32.totalorder %s181, %s183
      %p187 = scmp.eq.s32.totalorder %s23, 0
      %p188 = por %p186, %p187
      %p189 = scmp.ne.s32.totalorder %s181, %s183
      %p190 = scmp.eq.s32.totalorder %s28, 1
      %p191 = por %p189, %p190
      %p192 = scmp.ne.s32.totalorder %s183, %s184
      %p193 = scmp.eq.s32.totalorder %s28, 0
      %p194 = por %p192, %p193
      %p195 = scmp.ne.s32.totalorder %s183, %s184
      %p196 = scmp.eq.s32.totalorder %s29, 1
      %p197 = por %p195, %p196
      %p199 = scmp.ne.s32.totalorder %s184, %s198
      %p200 = scmp.eq.s32.totalorder %s29, 0
      %p201 = por %p199, %p200
      %s203 = sadd.s32 %s202, 1
      %p206 = scmp.eq.s32.totalorder %s23, 1
      %p207 = scmp.ne.s32.totalorder %s202, %s204
      %p208 = scmp.eq.s32.totalorder %s23, 0
      %p209 = por %p207, %p208
      %p210 = scmp.ne.s32.totalorder %s202, %s204
      %p211 = scmp.eq.s32.totalorder %s28, 1
      %p212 = por %p210, %p211
      %p213 = scmp.ne.s32.totalorder %s204, %s205
      %p214 = scmp.eq.s32.totalorder %s28, 0
      %p215 = por %p213, %p214
      %p216 = scmp.ne.s32.totalorder %s204, %s205
      %p217 = scmp.eq.s32.totalorder %s29, 1
      %p218 = por %p216, %p217
      %p220 = scmp.ne.s32.totalorder %s205, %s219
      %p221 = scmp.eq.s32.totalorder %s29, 0
      %p222 = por %p220, %p221
      %s223 = ssub.s32 %s30, %s42
      %s224 = ssub.s32 %s31, %s38
      %s225 = sor.u32 %s223, %s224
      %p226 = scmp.eq.s32.totalorder %s225, 0
      %s228 = sadd.s32 %s227, 1
      %s229 = scalar_select %p226, %s227, %s228
      %p232 = pneg %p226
      %p233 = scmp.eq.s32.totalorder %s23, 1
      %p234 = por %p232, %p233
      %p235 = scmp.ne.s32.totalorder %s227, %s230
      %p236 = scmp.eq.s32.totalorder %s23, 0
      %p237 = por %p235, %p236
      %p238 = scmp.ne.s32.totalorder %s227, %s230
      %p239 = scmp.eq.s32.totalorder %s28, 1
      %p240 = por %p238, %p239
      %p241 = scmp.ne.s32.totalorder %s230, %s231
      %p242 = scmp.eq.s32.totalorder %s28, 0
      %p243 = por %p241, %p242
      %p244 = scmp.ne.s32.totalorder %s230, %s231
      %p245 = scmp.eq.s32.totalorder %s29, 1
      %p246 = por %p244, %p245
      %p248 = scmp.ne.s32.totalorder %s231, %s247
      %p249 = scmp.eq.s32.totalorder %s29, 0
      %p250 = por %p248, %p249
      %s251 = ssub.s32 %s30, %s42
      %s252 = ssub.s32 %s31, %s38
      %s253 = sor.u32 %s251, %s252
      %p254 = scmp.eq.s32.totalorder %s253, 0
      %s256 = sadd.s32 %s255, 1
      %s257 = scalar_select %p254, %s255, %s256
      %p260 = pneg %p254
      %p261 = scmp.eq.s32.totalorder %s23, 1
      %p262 = por %p260, %p261
      %p263 = scmp.ne.s32.totalorder %s255, %s258
      %p264 = scmp.eq.s32.totalorder %s23, 0
      %p265 = por %p263, %p264
      %p266 = scmp.ne.s32.totalorder %s255, %s258
      %p267 = scmp.eq.s32.totalorder %s28, 1
      %p268 = por %p266, %p267
      %p269 = scmp.ne.s32.totalorder %s258, %s259
      %p270 = scmp.eq.s32.totalorder %s28, 0
      %p271 = por %p269, %p270
      %p272 = scmp.ne.s32.totalorder %s258, %s259
      %p273 = scmp.eq.s32.totalorder %s29, 1
      %p274 = por %p272, %p273
      %p276 = scmp.ne.s32.totalorder %s259, %s275
      %p277 = scmp.eq.s32.totalorder %s29, 0
      %p278 = por %p276, %p277
      %p279 = scmp.le.s32.totalorder 1, %s23
      %p280 = scmp.lt.s32.totalorder %s23, 3
      %p281 = pnand %p279, %p280
      %p282 = pneg %p281
      // Predicated region
      $region9: #{tpu_custom_call.1} parent=5 // pred_check
        _
      $region10: #{tpu_custom_call.1} parent=5 // pred_check_branch
        %284 = sbr.rel (%p281) target = $region12
      $region11: #{tpu_custom_call.1} parent=5 // pred_region
        %s285 = ssub.s32 %s23, 1
        // Predicated region
        $region13: #{tpu_custom_call.1} parent=11 // pred_check
          %p286 = pneg %p110
        $region14: #{tpu_custom_call.1} parent=11 // pred_check_branch
          %288 = sbr.rel (%p286) target = $region16
        $region15: #{tpu_custom_call.1} parent=11 // pred_region
          _
        $region16: #{tpu_custom_call.1} parent=11 // pred_fallthru
          _
        // Predicated region
        $region17: #{tpu_custom_call.1} parent=11 // pred_check
          %p289 = pneg %p131
        $region18: #{tpu_custom_call.1} parent=11 // pred_check_branch
          %291 = sbr.rel (%p289) target = $region20
        $region19: #{tpu_custom_call.1} parent=11 // pred_region
          _
        $region20: #{tpu_custom_call.1} parent=11 // pred_fallthru
          _
        // Predicated region
        $region21: #{tpu_custom_call.1} parent=11 // pred_check
          %p292 = pneg %p152
        $region22: #{tpu_custom_call.1} parent=11 // pred_check_branch
          %294 = sbr.rel (%p292) target = $region24
        $region23: #{tpu_custom_call.1} parent=11 // pred_region
          _
        $region24: #{tpu_custom_call.1} parent=11 // pred_fallthru
          _
        // Predicated region
        $region25: #{tpu_custom_call.1} parent=11 // pred_check
          %p295 = pneg %p173
        $region26: #{tpu_custom_call.1} parent=11 // pred_check_branch
          %297 = sbr.rel (%p295) target = $region28
        $region27: #{tpu_custom_call.1} parent=11 // pred_region
          _
        $region28: #{tpu_custom_call.1} parent=11 // pred_fallthru
          _
        // Predicated region
        $region29: #{tpu_custom_call.1} parent=11 // pred_check
          %p298 = pneg %p194
        $region30: #{tpu_custom_call.1} parent=11 // pred_check_branch
          %300 = sbr.rel (%p298) target = $region32
        $region31: #{tpu_custom_call.1} parent=11 // pred_region
          _
        $region32: #{tpu_custom_call.1} parent=11 // pred_fallthru
          _
        // Predicated region
        $region33: #{tpu_custom_call.1} parent=11 // pred_check
          %p301 = pneg %p215
        $region34: #{tpu_custom_call.1} parent=11 // pred_check_branch
          %303 = sbr.rel (%p301) target = $region36
        $region35: #{tpu_custom_call.1} parent=11 // pred_region
          _
        $region36: #{tpu_custom_call.1} parent=11 // pred_fallthru
          _
      $region12: #{tpu_custom_call.1} parent=5 // pred_fallthru
        _
      %p304 = scmp.lt.s32.totalorder %s23, 2
      // Predicated region
      $region37: #{tpu_custom_call.1} parent=5 // pred_check
        %p305 = pneg %p304
      $region38: #{tpu_custom_call.1} parent=5 // pred_check_branch
        %307 = sbr.rel (%p305) target = $region40
      $region39: #{tpu_custom_call.1} parent=5 // pred_region
        // Predicated region
        $region41: #{tpu_custom_call.1} parent=39 // pred_check
          %p308 = pneg %p55
        $region42: #{tpu_custom_call.1} parent=39 // pred_check_branch
          %310 = sbr.rel (%p308) target = $region44
        $region43: #{tpu_custom_call.1} parent=39 // pred_region
          %p311 = scmp.lt.s32.totalorder %s30, 1
          %s312 = scalar_select %p311, %s30, 1
          %s313 = smul.addr %s312, 2
          %s314 = smul.addr %s313, 8
          %s315 = scalar_lea.vmem %s0, %s314
        $region44: #{tpu_custom_call.1} parent=39 // pred_fallthru
          _
        // Predicated region
        $region45: #{tpu_custom_call.1} parent=39 // pred_check
          %p316 = pneg %p83
        $region46: #{tpu_custom_call.1} parent=39 // pred_check_branch
          %318 = sbr.rel (%p316) target = $region48
        $region47: #{tpu_custom_call.1} parent=39 // pred_region
          %p319 = scmp.lt.s32.totalorder %s30, 1
          %s320 = scalar_select %p319, %s30, 1
          %p321 = scmp.lt.s32.totalorder %s31, 0
          %s322 = scalar_select %p321, %s31, 0
          %s323 = sadd.s32 %s322, %s320
          %s324 = smul.addr %s323, 8
          %s325 = scalar_lea.vmem %s1, %s324
        $region48: #{tpu_custom_call.1} parent=39 // pred_fallthru
          _
      $region40: #{tpu_custom_call.1} parent=5 // pred_fallthru
        _
      %p326 = scmp.le.s32.totalorder 1, %s23
      %p327 = scmp.lt.s32.totalorder %s23, 3
      %p328 = pnand %p326, %p327
      %p329 = pneg %p328
      // Predicated region
      $region49: #{tpu_custom_call.1} parent=5 // pred_check
        _
      $region50: #{tpu_custom_call.1} parent=5 // pred_check_branch
        %331 = sbr.rel (%p328) target = $region52
      $region51: #{tpu_custom_call.1} parent=5 // pred_region
        %s332 = ssub.s32 %s23, 1
        %p333 = scmp.lt.s32.totalorder %s32, 1
        %s334 = scalar_select %p333, %s32, 1
        %s335 = smul.addr %s334, 2
        %s336 = smul.addr %s335, 8
        %s337 = scalar_lea.vmem %s0, %s336
        %p338 = pneg %p61
        %p339 = pneg %p58
        %p340 = scmp.lt.s32.totalorder %s32, 1
        %s341 = scalar_select %p340, %s32, 1
        %p342 = scmp.lt.s32.totalorder %s33, 0
        %s343 = scalar_select %p342, %s33, 0
        %s344 = sadd.s32 %s343, %s341
        %s345 = smul.addr %s344, 8
        %s346 = scalar_lea.vmem %s1, %s345
        %p347 = pneg %p89
        %p348 = pneg %p86
        %p349 = pneg %p110
        %p350 = pneg %p107
        %p351 = pneg %p131
        %p352 = pneg %p128
        %p353 = pneg %p152
        %p354 = pneg %p149
        %p355 = pneg %p173
        %p356 = pneg %p170
        %p357 = pneg %p194
        %p358 = pneg %p191
        %p359 = pneg %p215
        %p360 = pneg %p212
        %p361 = pneg %p243
        %p362 = pneg %p240
        %s363 = sand.u32 %s230, 1
        %s364 = scalar_lea.sflag [#allocation4], %s363
        %s365 = sand.u32 %s230, 1
        %s366 = smul.addr %s365, 8
        %s367 = scalar_lea.vmem [#allocation3], %s366
        %p368 = pneg %p271
        %p369 = pneg %p268
        %s370 = sand.u32 %s258, 1
        %s371 = scalar_lea.sflag [#allocation6], %s370
        %s372 = sand.u32 %s258, 1
        %s373 = smul.addr %s372, 8
        %s374 = scalar_lea.vmem [#allocation5], %s373
        %p375 = scmp.lt.s32.totalorder %s32, 1
        %s376 = scalar_select %p375, %s32, 1
        %s377 = smul.addr %s376, 2
        %s378 = smul.addr %s377, 8
        %s379 = scalar_lea.vmem %s0, %s378
        %p380 = scmp.lt.s32.totalorder %s32, 1
        %s381 = scalar_select %p380, %s32, 1
        %p382 = scmp.lt.s32.totalorder %s33, 0
        %s383 = scalar_select %p382, %s33, 0
        %s384 = sadd.s32 %s383, %s381
        %s385 = smul.addr %s384, 8
        %s386 = scalar_lea.vmem %s1, %s385
        %v387 = vld [vmem:[%s2] sm:$0xf]
        %v388 = vld [vmem:[%s3] sm:$0x1]
        %v389 = vld [vmem:[%s4] sm:$0x1]
        %s390 = sld [smem:[#allocation2]]
        %v391 = vld [vmem:[%s6] sm:$0xf]
        %v392 = vld [vmem:[%s7] sm:$0x1]
        %v393 = vld [vmem:[%s379] sm:$0xff]
        %v394 = vld [vmem:[%s379 + $0x8] sm:$0xff]
        %v395 = vld [vmem:[%s386] sm:$0xff]
        %v397 = vlaneseq
        %v398 = vshrl.u32 %v397, 7
        %v399 = vsub.s32 0, %v398
        %v400 = vrot.slane %v388, %v399
        %vm402 = vcmask 31744
        %v404 = vsel %vm402, %v393, 0
        %v407 = vsel %vm402, %v394, 0
        %vm409 = vcmask 1043456
        %v411 = vsel %vm409, %v387, 0
        %413 = vmatprep.subr.mxu0 0.0
        %414 = vmatpush1.msra.mxu0 0.0
        %415 = vmatprep.subr.mxu0 0.0
        %416 = vmatpush1.msra.mxu0 0.0
        %417 = vmatprep.subr.mxu0 0.0
        %418 = vmatpush1.msra.mxu0 0.0
        %419 = vmatprep.subr.mxu0 0.0
        %420 = vmatpush1.msra.mxu0 0.0
        %421 = vmatprep.subr.mxu0 0.0
        %422 = vmatpush1.msra.mxu0 0.0
        %423 = vmatprep.subr.mxu0 0.0
        %424 = vmatpush1.msra.mxu0 0.0
        %425 = vmatprep.subr.mxu0 0.0
        %426 = vmatpush1.msra.mxu0 0.0
        %427 = vmatprep.subr.mxu0 0.0
        %428 = vmatpush1.msra.mxu0 0.0
        %429 = vmatprep.subr.mxu0 0.0
        %430 = vmatpush1.msra.mxu0 0.0
        %431 = vmatprep.subr.mxu0 0.0
        %432 = vmatpush1.msra.mxu0 0.0
        %433 = vmatprep.subr.mxu0 0.0
        %434 = vmatpush1.msra.mxu0 0.0
        %435 = vmatprep.subr.mxu0 0.0
        %436 = vmatpush1.msra.mxu0 0.0
        %437 = vmatprep.subr.mxu0 0.0
        %438 = vmatpush1.msra.mxu0 0.0
        %439 = vmatprep.subr.mxu0 0.0
        %440 = vmatpush1.msra.mxu0 0.0
        %441 = vmatprep.subr.mxu0 0.0
        %442 = vmatpush1.msra.mxu0 0.0
        %443 = vmatprep.subr.mxu0 0.0
        %444 = vmatpush1.msra.mxu0 %v411
        %445 = vmatprep.subr.mxu0 0.0
        %446 = vmatpush2.msra.mxu0 0.0
        %447 = vmatprep.subr.mxu0 0.0
        %448 = vmatpush2.msra.mxu0 0.0
        %449 = vmatprep.subr.mxu0 0.0
        %450 = vmatpush2.msra.mxu0 0.0
        %451 = vmatprep.subr.mxu0 0.0
        %452 = vmatpush2.msra.mxu0 0.0
        %453 = vmatprep.subr.mxu0 0.0
        %454 = vmatpush2.msra.mxu0 0.0
        %455 = vmatprep.subr.mxu0 0.0
        %456 = vmatpush2.msra.mxu0 0.0
        %457 = vmatprep.subr.mxu0 0.0
        %458 = vmatpush2.msra.mxu0 0.0
        %459 = vmatprep.subr.mxu0 0.0
        %460 = vmatpush2.msra.mxu0 0.0
        %461 = vmatprep.subr.mxu0 0.0
        %462 = vmatpush2.msra.mxu0 0.0
        %463 = vmatprep.subr.mxu0 0.0
        %464 = vmatpush2.msra.mxu0 0.0
        %465 = vmatprep.subr.mxu0 0.0
        %466 = vmatpush2.msra.mxu0 0.0
        %467 = vmatprep.subr.mxu0 0.0
        %468 = vmatpush2.msra.mxu0 0.0
        %469 = vmatprep.subr.mxu0 0.0
        %470 = vmatpush2.msra.mxu0 0.0
        %471 = vmatprep.subr.mxu0 0.0
        %472 = vmatpush2.msra.mxu0 0.0
        %473 = vmatprep.subr.mxu0 0.0
        %474 = vmatpush2.msra.mxu0 0.0
        %475 = vmatprep.subr.mxu0 0.0
        %476 = vmatpush2.msra.mxu0 0.0
        %477 = vmatprep.mubr.f32.mxu0 0.0
        %478 = vmatmul.mubr.f32.gmra.mxu0 %v404
        %v479 = vpop.f32.mrf.mxu0
        %v480 = vadd.f32 %v400, %v479
        %v481 = vpop.f32.mrf.mxu0
        %482 = vmatprep.mubr.f32.mxu0 0.0
        %483 = vmatmul.mubr.f32.gmra.mxu0 %v407
        %v484 = vpop.f32.mrf.mxu0
        %v485 = vadd.f32 %v400, %v484
        %v486 = vpop.f32.mrf.mxu0
        %487 = vdwg.mxu0
        %v489 = vcombine.high %v395, %v395
        %v491 = vunpack.c.l.s4 1966171168
        %v492 = vunpack.c.0.s8 %v491
        %v493 = vlaneseq
        %v494 = vshrl.u32 %v493, 7
        %v495 = vsub.s32 %v492, %v494
        %v496 = vrot.slane %v395, %v495
        %v498 = vunpack.c.l.s4 1966171168
        %v499 = vunpack.c.0.s8 %v498
        %v500 = vlaneseq
        %v501 = vshrl.u32 %v500, 7
        %v502 = vsub.s32 %v499, %v501
        %v503 = vrot.slane %v489, %v502
        %v504 = vcombine.high %v496, %v496
        %v505 = vcombine.high %v503, %v503
        %v507 = vunpack.c.l.s4 1966171168
        %v508 = vunpack.c.0.s8 %v507
        %v509 = vlaneseq
        %v510 = vshrl.u32 %v509, 7
        %v511 = vsub.s32 %v508, %v510
        %v512 = vrot.slane %v496, %v511
        %v514 = vunpack.c.l.s4 1966171168
        %v515 = vunpack.c.0.s8 %v514
        %v516 = vlaneseq
        %v517 = vshrl.u32 %v516, 7
        %v518 = vsub.s32 %v515, %v517
        %v519 = vrot.slane %v503, %v518
        %v521 = vunpack.c.l.s4 1966171168
        %v522 = vunpack.c.0.s8 %v521
        %v523 = vlaneseq
        %v524 = vshrl.u32 %v523, 7
        %v525 = vsub.s32 %v522, %v524
        %v526 = vrot.slane %v504, %v525
        %v528 = vunpack.c.l.s4 1966171168
        %v529 = vunpack.c.0.s8 %v528
        %v530 = vlaneseq
        %v531 = vshrl.u32 %v530, 7
        %v532 = vsub.s32 %v529, %v531
        %v533 = vrot.slane %v505, %v532
        %v534 = vcombine.high %v512, %v512
        %v535 = vcombine.high %v519, %v519
        %v536 = vcombine.high %v526, %v526
        %v537 = vcombine.high %v533, %v533
        %v538 = vlaneseq
        %v539 = vshrl.u32 %v538, 7
        %v540 = vsub.s32 0, %v539
        %v541 = vrot.slane %v512, %v540
        %v542 = vlaneseq
        %v543 = vshrl.u32 %v542, 7
        %v544 = vsub.s32 0, %v543
        %v545 = vrot.slane %v526, %v544
        %v546 = vlaneseq
        %v547 = vshrl.u32 %v546, 7
        %v548 = vsub.s32 0, %v547
        %v549 = vrot.slane %v534, %v548
        %v550 = vlaneseq
        %v551 = vshrl.u32 %v550, 7
        %v552 = vsub.s32 0, %v551
        %v553 = vrot.slane %v536, %v552
        %v554 = vlaneseq
        %v555 = vshrl.u32 %v554, 7
        %v556 = vsub.s32 0, %v555
        %v557 = vrot.slane %v519, %v556
        %v558 = vlaneseq
        %v559 = vshrl.u32 %v558, 7
        %v560 = vsub.s32 0, %v559
        %v561 = vrot.slane %v533, %v560
        %v562 = vlaneseq
        %v563 = vshrl.u32 %v562, 7
        %v564 = vsub.s32 0, %v563
        %v565 = vrot.slane %v535, %v564
        %v566 = vlaneseq
        %v567 = vshrl.u32 %v566, 7
        %v568 = vsub.s32 0, %v567
        %v569 = vrot.slane %v537, %v568
        %v578 = vadd.f32 %v480, %v541
        %v579 = vadd.f32 %v485, %v541
        %v580 = vadd.f32 %v480, %v545
        %v581 = vadd.f32 %v485, %v545
        %v582 = vadd.f32 %v480, %v549
        %v583 = vadd.f32 %v485, %v549
        %v584 = vadd.f32 %v480, %v553
        %v585 = vadd.f32 %v485, %v553
        %v586 = vadd.f32 %v480, %v557
        %v587 = vadd.f32 %v485, %v557
        %v588 = vadd.f32 %v480, %v561
        %v589 = vadd.f32 %v485, %v561
        %v590 = vadd.f32 %v480, %v565
        %v591 = vadd.f32 %v485, %v565
        %v592 = vadd.f32 %v480, %v569
        %v593 = vadd.f32 %v485, %v569
        %v594 = vmax.f32 %v578, 0.0
        %v595 = vmax.f32 %v579, 0.0
        %v596 = vmax.f32 %v580, 0.0
        %v597 = vmax.f32 %v581, 0.0
        %v598 = vmax.f32 %v582, 0.0
        %v599 = vmax.f32 %v583, 0.0
        %v600 = vmax.f32 %v584, 0.0
        %v601 = vmax.f32 %v585, 0.0
        %v602 = vmax.f32 %v586, 0.0
        %v603 = vmax.f32 %v587, 0.0
        %v604 = vmax.f32 %v588, 0.0
        %v605 = vmax.f32 %v589, 0.0
        %v606 = vmax.f32 %v590, 0.0
        %v607 = vmax.f32 %v591, 0.0
        %v608 = vmax.f32 %v592, 0.0
        %v609 = vmax.f32 %v593, 0.0
        %v611 = vlaneseq
        %v612 = vshrl.u32 %v611, 7
        %v613 = vsub.s32 0, %v612
        %v614 = vrot.slane %v389, %v613
        %v616 = vmul.f32 %v594, %v614
        %v617 = vmul.f32 %v595, %v614
        %v618 = vmul.f32 %v596, %v614
        %v619 = vmul.f32 %v597, %v614
        %v620 = vmul.f32 %v598, %v614
        %v621 = vmul.f32 %v599, %v614
        %v622 = vmul.f32 %v600, %v614
        %v623 = vmul.f32 %v601, %v614
        %v624 = vmul.f32 %v602, %v614
        %v625 = vmul.f32 %v603, %v614
        %v626 = vmul.f32 %v604, %v614
        %v627 = vmul.f32 %v605, %v614
        %v628 = vmul.f32 %v606, %v614
        %v629 = vmul.f32 %v607, %v614
        %v630 = vmul.f32 %v608, %v614
        %v631 = vmul.f32 %v609, %v614
        %vm632 = vcmask 261120
        %v633 = vsel %vm632, %v616, 0.0
        %634 = vadd.xlane.f32.xlu0 %v633
        %v635 = vpop.xlane.xlu0 %634
        %v636 = vsel %vm632, %v617, 0.0
        %637 = vadd.xlane.f32.xlu0 %v636
        %v638 = vpop.xlane.xlu0 %637
        %v639 = vsel %vm632, %v618, 0.0
        %640 = vadd.xlane.f32.xlu0 %v639
        %v641 = vpop.xlane.xlu0 %640
        %v642 = vsel %vm632, %v619, 0.0
        %643 = vadd.xlane.f32.xlu0 %v642
        %v644 = vpop.xlane.xlu0 %643
        %v645 = vsel %vm632, %v620, 0.0
        %646 = vadd.xlane.f32.xlu0 %v645
        %v647 = vpop.xlane.xlu0 %646
        %v648 = vsel %vm632, %v621, 0.0
        %649 = vadd.xlane.f32.xlu0 %v648
        %v650 = vpop.xlane.xlu0 %649
        %v651 = vsel %vm632, %v622, 0.0
        %652 = vadd.xlane.f32.xlu0 %v651
        %v653 = vpop.xlane.xlu0 %652
        %v654 = vsel %vm632, %v623, 0.0
        %655 = vadd.xlane.f32.xlu0 %v654
        %v656 = vpop.xlane.xlu0 %655
        %v657 = vsel %vm632, %v624, 0.0
        %658 = vadd.xlane.f32.xlu0 %v657
        %v659 = vpop.xlane.xlu0 %658
        %v660 = vsel %vm632, %v625, 0.0
        %661 = vadd.xlane.f32.xlu0 %v660
        %v662 = vpop.xlane.xlu0 %661
        %v663 = vsel %vm632, %v626, 0.0
        %664 = vadd.xlane.f32.xlu0 %v663
        %v665 = vpop.xlane.xlu0 %664
        %v666 = vsel %vm632, %v627, 0.0
        %667 = vadd.xlane.f32.xlu0 %v666
        %v668 = vpop.xlane.xlu0 %667
        %v669 = vsel %vm632, %v628, 0.0
        %670 = vadd.xlane.f32.xlu0 %v669
        %v671 = vpop.xlane.xlu0 %670
        %v672 = vsel %vm632, %v629, 0.0
        %673 = vadd.xlane.f32.xlu0 %v672
        %v674 = vpop.xlane.xlu0 %673
        %v675 = vsel %vm632, %v630, 0.0
        %676 = vadd.xlane.f32.xlu0 %v675
        %v677 = vpop.xlane.xlu0 %676
        %v678 = vsel %vm632, %v631, 0.0
        %679 = vadd.xlane.f32.xlu0 %v678
        %v680 = vpop.xlane.xlu0 %679
        %v681 = vstv %s390
        %v682 = vadd.f32 %v635, %v681
        %v683 = vadd.f32 %v638, %v681
        %v684 = vadd.f32 %v641, %v681
        %v685 = vadd.f32 %v644, %v681
        %v686 = vadd.f32 %v647, %v681
        %v687 = vadd.f32 %v650, %v681
        %v688 = vadd.f32 %v653, %v681
        %v689 = vadd.f32 %v656, %v681
        %v690 = vadd.f32 %v659, %v681
        %v691 = vadd.f32 %v662, %v681
        %v692 = vadd.f32 %v665, %v681
        %v693 = vadd.f32 %v668, %v681
        %v694 = vadd.f32 %v671, %v681
        %v695 = vadd.f32 %v674, %v681
        %v696 = vadd.f32 %v677, %v681
        %v697 = vadd.f32 %v680, %v681
        %v714 = vlaneseq
        %v715 = vand.u32 %v714, 127
        %v716 = vlaneseq
        %v717 = vshrl.u32 %v716, 7
        %v718 = vsub.s32 %v715, %v717
        %v719 = vrot.slane %v682, %v718
        %v720 = vadd.s32 %v715, 4294967288
        %v721 = vlaneseq
        %v722 = vshrl.u32 %v721, 7
        %v723 = vsub.s32 %v720, %v722
        %v724 = vrot.slane %v683, %v723
        %vm725 = vcmask 130112
        %v726 = vsel %vm725, %v724, %v719
        %v727 = vlaneseq
        %v728 = vshrl.u32 %v727, 7
        %v729 = vsub.s32 %v715, %v728
        %v730 = vrot.slane %v684, %v729
        %v731 = vlaneseq
        %v732 = vshrl.u32 %v731, 7
        %v733 = vsub.s32 %v720, %v732
        %v734 = vrot.slane %v685, %v733
        %v735 = vsel %vm725, %v734, %v730
        %v736 = vlaneseq
        %v737 = vshrl.u32 %v736, 7
        %v738 = vsub.s32 %v715, %v737
        %v739 = vrot.slane %v686, %v738
        %v740 = vlaneseq
        %v741 = vshrl.u32 %v740, 7
        %v742 = vsub.s32 %v720, %v741
        %v743 = vrot.slane %v687, %v742
        %v744 = vsel %vm725, %v743, %v739
        %v745 = vlaneseq
        %v746 = vshrl.u32 %v745, 7
        %v747 = vsub.s32 %v715, %v746
        %v748 = vrot.slane %v688, %v747
        %v749 = vlaneseq
        %v750 = vshrl.u32 %v749, 7
        %v751 = vsub.s32 %v720, %v750
        %v752 = vrot.slane %v689, %v751
        %v753 = vsel %vm725, %v752, %v748
        %v754 = vlaneseq
        %v755 = vshrl.u32 %v754, 7
        %v756 = vsub.s32 %v715, %v755
        %v757 = vrot.slane %v690, %v756
        %v758 = vlaneseq
        %v759 = vshrl.u32 %v758, 7
        %v760 = vsub.s32 %v720, %v759
        %v761 = vrot.slane %v691, %v760
        %v762 = vsel %vm725, %v761, %v757
        %v763 = vlaneseq
        %v764 = vshrl.u32 %v763, 7
        %v765 = vsub.s32 %v715, %v764
        %v766 = vrot.slane %v692, %v765
        %v767 = vlaneseq
        %v768 = vshrl.u32 %v767, 7
        %v769 = vsub.s32 %v720, %v768
        %v770 = vrot.slane %v693, %v769
        %v771 = vsel %vm725, %v770, %v766
        %v772 = vlaneseq
        %v773 = vshrl.u32 %v772, 7
        %v774 = vsub.s32 %v715, %v773
        %v775 = vrot.slane %v694, %v774
        %v776 = vlaneseq
        %v777 = vshrl.u32 %v776, 7
        %v778 = vsub.s32 %v720, %v777
        %v779 = vrot.slane %v695, %v778
        %v780 = vsel %vm725, %v779, %v775
        %v781 = vlaneseq
        %v782 = vshrl.u32 %v781, 7
        %v783 = vsub.s32 %v715, %v782
        %v784 = vrot.slane %v696, %v783
        %v785 = vlaneseq
        %v786 = vshrl.u32 %v785, 7
        %v787 = vsub.s32 %v720, %v786
        %v788 = vrot.slane %v697, %v787
        %v789 = vsel %vm725, %v788, %v784
        %vm790 = vcmask 1041409
        %v791 = vsel %vm790, %v735, %v726
        %vm792 = vcmask 1042434
        %v793 = vsel %vm792, %v744, %v791
        %vm794 = vcmask 1043459
        %v795 = vsel %vm794, %v753, %v793
        %vm796 = vcmask 1044484
        %v797 = vsel %vm796, %v762, %v795
        %vm798 = vcmask 1045509
        %v799 = vsel %vm798, %v771, %v797
        %vm800 = vcmask 1046534
        %v801 = vsel %vm800, %v780, %v799
        %vm802 = vcmask 1047559
        %v803 = vsel %vm802, %v789, %v801
        %vm805 = vcmask 130048
        %v806 = vsel %vm805, %v803, -inf
        %807 = vmax.xlane.f32.xlu0 %v806
        %v808 = vpop.xlane.xlu0 %807
        %v810 = vlaneseq
        %v811 = vshrl.u32 %v810, 7
        %v812 = vsub.s32 0, %v811
        %v813 = vrot.slane %v808, %v812
        %v814 = vlaneseq
        %v815 = vshrl.u32 %v814, 7
        %v816 = vsub.s32 1, %v815
        %v817 = vrot.slane %v808, %v816
        %v818 = vlaneseq
        %v819 = vshrl.u32 %v818, 7
        %v820 = vsub.s32 2, %v819
        %v821 = vrot.slane %v808, %v820
        %v822 = vlaneseq
        %v823 = vshrl.u32 %v822, 7
        %v824 = vsub.s32 3, %v823
        %v825 = vrot.slane %v808, %v824
        %v826 = vlaneseq
        %v827 = vshrl.u32 %v826, 7
        %v828 = vsub.s32 4, %v827
        %v829 = vrot.slane %v808, %v828
        %v830 = vlaneseq
        %v831 = vshrl.u32 %v830, 7
        %v832 = vsub.s32 5, %v831
        %v833 = vrot.slane %v808, %v832
        %v834 = vlaneseq
        %v835 = vshrl.u32 %v834, 7
        %v836 = vsub.s32 6, %v835
        %v837 = vrot.slane %v808, %v836
        %v838 = vlaneseq
        %v839 = vshrl.u32 %v838, 7
        %v840 = vsub.s32 7, %v839
        %v841 = vrot.slane %v808, %v840
        %v850 = vsub.f32 %v682, %v813
        %v851 = vsub.f32 %v683, %v813
        %v852 = vsub.f32 %v684, %v817
        %v853 = vsub.f32 %v685, %v817
        %v854 = vsub.f32 %v686, %v821
        %v855 = vsub.f32 %v687, %v821
        %v856 = vsub.f32 %v688, %v825
        %v857 = vsub.f32 %v689, %v825
        %v858 = vsub.f32 %v690, %v829
        %v859 = vsub.f32 %v691, %v829
        %v860 = vsub.f32 %v692, %v833
        %v861 = vsub.f32 %v693, %v833
        %v862 = vsub.f32 %v694, %v837
        %v863 = vsub.f32 %v695, %v837
        %v864 = vsub.f32 %v696, %v841
        %v865 = vsub.f32 %v697, %v841
        %v866 = vmul.f32 %v850, 1.442695
        %v867 = vpow.pop %v866
        %v868 = vmul.f32 %v851, 1.442695
        %v869 = vpow.pop %v868
        %v870 = vmul.f32 %v852, 1.442695
        %v871 = vpow.pop %v870
        %v872 = vmul.f32 %v853, 1.442695
        %v873 = vpow.pop %v872
        %v874 = vmul.f32 %v854, 1.442695
        %v875 = vpow.pop %v874
        %v876 = vmul.f32 %v855, 1.442695
        %v877 = vpow.pop %v876
        %v878 = vmul.f32 %v856, 1.442695
        %v879 = vpow.pop %v878
        %v880 = vmul.f32 %v857, 1.442695
        %v881 = vpow.pop %v880
        %v882 = vmul.f32 %v858, 1.442695
        %v883 = vpow.pop %v882
        %v884 = vmul.f32 %v859, 1.442695
        %v885 = vpow.pop %v884
        %v886 = vmul.f32 %v860, 1.442695
        %v887 = vpow.pop %v886
        %v888 = vmul.f32 %v861, 1.442695
        %v889 = vpow.pop %v888
        %v890 = vmul.f32 %v862, 1.442695
        %v891 = vpow.pop %v890
        %v892 = vmul.f32 %v863, 1.442695
        %v893 = vpow.pop %v892
        %v894 = vmul.f32 %v864, 1.442695
        %v895 = vpow.pop %v894
        %v896 = vmul.f32 %v865, 1.442695
        %v897 = vpow.pop %v896
        %914 = vset.pattern.permute.xlu0 0
        %915 = vperm.xlu0 %914, %v867
        %v916 = vpop.permute.xlu0 %915
        %917 = vset.pattern.permute.xlu0 0
        %918 = vperm.xlu0 %917, %v869
        %v919 = vpop.permute.xlu0 %918
        %920 = vset.pattern.permute.xlu0 0
        %921 = vperm.xlu0 %920, %v871
        %v922 = vpop.permute.xlu0 %921
        %923 = vset.pattern.permute.xlu0 0
        %924 = vperm.xlu0 %923, %v873
        %v925 = vpop.permute.xlu0 %924
        %926 = vset.pattern.permute.xlu0 0
        %927 = vperm.xlu0 %926, %v875
        %v928 = vpop.permute.xlu0 %927
        %929 = vset.pattern.permute.xlu0 0
        %930 = vperm.xlu0 %929, %v877
        %v931 = vpop.permute.xlu0 %930
        %932 = vset.pattern.permute.xlu0 0
        %933 = vperm.xlu0 %932, %v879
        %v934 = vpop.permute.xlu0 %933
        %935 = vset.pattern.permute.xlu0 0
        %936 = vperm.xlu0 %935, %v881
        %v937 = vpop.permute.xlu0 %936
        %938 = vset.pattern.permute.xlu0 0
        %939 = vperm.xlu0 %938, %v883
        %v940 = vpop.permute.xlu0 %939
        %941 = vset.pattern.permute.xlu0 0
        %942 = vperm.xlu0 %941, %v885
        %v943 = vpop.permute.xlu0 %942
        %944 = vset.pattern.permute.xlu0 0
        %945 = vperm.xlu0 %944, %v887
        %v946 = vpop.permute.xlu0 %945
        %947 = vset.pattern.permute.xlu0 0
        %948 = vperm.xlu0 %947, %v889
        %v949 = vpop.permute.xlu0 %948
        %950 = vset.pattern.permute.xlu0 0
        %951 = vperm.xlu0 %950, %v891
        %v952 = vpop.permute.xlu0 %951
        %953 = vset.pattern.permute.xlu0 0
        %954 = vperm.xlu0 %953, %v893
        %v955 = vpop.permute.xlu0 %954
        %956 = vset.pattern.permute.xlu0 0
        %957 = vperm.xlu0 %956, %v895
        %v958 = vpop.permute.xlu0 %957
        %959 = vset.pattern.permute.xlu0 0
        %960 = vperm.xlu0 %959, %v897
        %v961 = vpop.permute.xlu0 %960
        %v962 = vlaneseq
        %v963 = vshrl.u32 %v962, 7
        %v964 = vsub.s32 %v715, %v963
        %v965 = vrot.slane %v916, %v964
        %v966 = vlaneseq
        %v967 = vshrl.u32 %v966, 7
        %v968 = vsub.s32 %v720, %v967
        %v969 = vrot.slane %v919, %v968
        %v970 = vsel %vm725, %v969, %v965
        %v971 = vlaneseq
        %v972 = vshrl.u32 %v971, 7
        %v973 = vsub.s32 %v715, %v972
        %v974 = vrot.slane %v922, %v973
        %v975 = vlaneseq
        %v976 = vshrl.u32 %v975, 7
        %v977 = vsub.s32 %v720, %v976
        %v978 = vrot.slane %v925, %v977
        %v979 = vsel %vm725, %v978, %v974
        %v980 = vlaneseq
        %v981 = vshrl.u32 %v980, 7
        %v982 = vsub.s32 %v715, %v981
        %v983 = vrot.slane %v928, %v982
        %v984 = vlaneseq
        %v985 = vshrl.u32 %v984, 7
        %v986 = vsub.s32 %v720, %v985
        %v987 = vrot.slane %v931, %v986
        %v988 = vsel %vm725, %v987, %v983
        %v989 = vlaneseq
        %v990 = vshrl.u32 %v989, 7
        %v991 = vsub.s32 %v715, %v990
        %v992 = vrot.slane %v934, %v991
        %v993 = vlaneseq
        %v994 = vshrl.u32 %v993, 7
        %v995 = vsub.s32 %v720, %v994
        %v996 = vrot.slane %v937, %v995
        %v997 = vsel %vm725, %v996, %v992
        %v998 = vlaneseq
        %v999 = vshrl.u32 %v998, 7
        %v1000 = vsub.s32 %v715, %v999
        %v1001 = vrot.slane %v940, %v1000
        %v1002 = vlaneseq
        %v1003 = vshrl.u32 %v1002, 7
        %v1004 = vsub.s32 %v720, %v1003
        %v1005 = vrot.slane %v943, %v1004
        %v1006 = vsel %vm725, %v1005, %v1001
        %v1007 = vlaneseq
        %v1008 = vshrl.u32 %v1007, 7
        %v1009 = vsub.s32 %v715, %v1008
        %v1010 = vrot.slane %v946, %v1009
        %v1011 = vlaneseq
        %v1012 = vshrl.u32 %v1011, 7
        %v1013 = vsub.s32 %v720, %v1012
        %v1014 = vrot.slane %v949, %v1013
        %v1015 = vsel %vm725, %v1014, %v1010
        %v1016 = vlaneseq
        %v1017 = vshrl.u32 %v1016, 7
        %v1018 = vsub.s32 %v715, %v1017
        %v1019 = vrot.slane %v952, %v1018
        %v1020 = vlaneseq
        %v1021 = vshrl.u32 %v1020, 7
        %v1022 = vsub.s32 %v720, %v1021
        %v1023 = vrot.slane %v955, %v1022
        %v1024 = vsel %vm725, %v1023, %v1019
        %v1025 = vlaneseq
        %v1026 = vshrl.u32 %v1025, 7
        %v1027 = vsub.s32 %v715, %v1026
        %v1028 = vrot.slane %v958, %v1027
        %v1029 = vlaneseq
        %v1030 = vshrl.u32 %v1029, 7
        %v1031 = vsub.s32 %v720, %v1030
        %v1032 = vrot.slane %v961, %v1031
        %v1033 = vsel %vm725, %v1032, %v1028
        %v1034 = vsel %vm790, %v979, %v970
        %v1035 = vsel %vm792, %v988, %v1034
        %v1036 = vsel %vm794, %v997, %v1035
        %v1037 = vsel %vm796, %v1006, %v1036
        %v1038 = vsel %vm798, %v1015, %v1037
        %v1039 = vsel %vm800, %v1024, %v1038
        %v1040 = vsel %vm802, %v1033, %v1039
        %v1042 = vsel %vm805, %v1040, 0.0
        %1043 = vadd.xlane.f32.xlu0 %v1042
        %v1044 = vpop.xlane.xlu0 %1043
        %v1045 = vsel %vm805, %v1040, 0
        %1047 = vmatprep.subr.mxu0 0.0
        %1048 = vmatpush1.msra.mxu0 0.0
        %1049 = vmatprep.subr.mxu0 0.0
        %1050 = vmatpush1.msra.mxu0 0.0
        %1051 = vmatprep.subr.mxu0 0.0
        %1052 = vmatpush1.msra.mxu0 0.0
        %1053 = vmatprep.subr.mxu0 0.0
        %1054 = vmatpush1.msra.mxu0 0.0
        %1055 = vmatprep.subr.mxu0 0.0
        %1056 = vmatpush1.msra.mxu0 0.0
        %1057 = vmatprep.subr.mxu0 0.0
        %1058 = vmatpush1.msra.mxu0 0.0
        %1059 = vmatprep.subr.mxu0 0.0
        %1060 = vmatpush1.msra.mxu0 0.0
        %1061 = vmatprep.subr.mxu0 0.0
        %1062 = vmatpush1.msra.mxu0 0.0
        %1063 = vmatprep.subr.mxu0 0.0
        %1064 = vmatpush1.msra.mxu0 0.0
        %1065 = vmatprep.subr.mxu0 0.0
        %1066 = vmatpush1.msra.mxu0 0.0
        %1067 = vmatprep.subr.mxu0 0.0
        %1068 = vmatpush1.msra.mxu0 0.0
        %1069 = vmatprep.subr.mxu0 0.0
        %1070 = vmatpush1.msra.mxu0 0.0
        %1071 = vmatprep.subr.mxu0 0.0
        %1072 = vmatpush1.msra.mxu0 0.0
        %1073 = vmatprep.subr.mxu0 0.0
        %1074 = vmatpush1.msra.mxu0 0.0
        %1075 = vmatprep.subr.mxu0 0.0
        %1076 = vmatpush1.msra.mxu0 %v394
        %1077 = vmatprep.subr.mxu0 0.0
        %1078 = vmatpush1.msra.mxu0 %v393
        %1079 = vmatprep.subr.mxu0 0.0
        %1080 = vmatpush2.msra.mxu0 0.0
        %1081 = vmatprep.subr.mxu0 0.0
        %1082 = vmatpush2.msra.mxu0 0.0
        %1083 = vmatprep.subr.mxu0 0.0
        %1084 = vmatpush2.msra.mxu0 0.0
        %1085 = vmatprep.subr.mxu0 0.0
        %1086 = vmatpush2.msra.mxu0 0.0
        %1087 = vmatprep.subr.mxu0 0.0
        %1088 = vmatpush2.msra.mxu0 0.0
        %1089 = vmatprep.subr.mxu0 0.0
        %1090 = vmatpush2.msra.mxu0 0.0
        %1091 = vmatprep.subr.mxu0 0.0
        %1092 = vmatpush2.msra.mxu0 0.0
        %1093 = vmatprep.subr.mxu0 0.0
        %1094 = vmatpush2.msra.mxu0 0.0
        %1095 = vmatprep.subr.mxu0 0.0
        %1096 = vmatpush2.msra.mxu0 0.0
        %1097 = vmatprep.subr.mxu0 0.0
        %1098 = vmatpush2.msra.mxu0 0.0
        %1099 = vmatprep.subr.mxu0 0.0
        %1100 = vmatpush2.msra.mxu0 0.0
        %1101 = vmatprep.subr.mxu0 0.0
        %1102 = vmatpush2.msra.mxu0 0.0
        %1103 = vmatprep.subr.mxu0 0.0
        %1104 = vmatpush2.msra.mxu0 0.0
        %1105 = vmatprep.subr.mxu0 0.0
        %1106 = vmatpush2.msra.mxu0 0.0
        %1107 = vmatprep.subr.mxu0 0.0
        %1108 = vmatpush2.msra.mxu0 0.0
        %1109 = vmatprep.subr.mxu0 0.0
        %1110 = vmatpush2.msra.mxu0 0.0
        %1111 = vmatprep.mubr.f32.mxu0 0.0
        %1112 = vmatmul.mubr.f32.gmra.mxu0 %v1045
        %v1113 = vpop.f32.mrf.mxu0
        %v1114 = vadd.f32 0.0, %v1113
        %v1115 = vpop.f32.mrf.mxu0
        %1116 = vdwg.mxu0
        %v1117 = vrcp.pop %v1044
        %v1118 = vmul.f32 %v1114, %v1117
        %v1120 = vlaneseq
        %v1121 = vshrl.u32 %v1120, 7
        %v1122 = vsub.s32 0, %v1121
        %v1123 = vrot.slane %v392, %v1122
        %v1126 = vsel %vm402, %v1118, 0
        %v1129 = vsel %vm409, %v391, 0
        %1131 = vmatprep.subr.mxu0 0.0
        %1132 = vmatpush1.msra.mxu0 0.0
        %1133 = vmatprep.subr.mxu0 0.0
        %1134 = vmatpush1.msra.mxu0 0.0
        %1135 = vmatprep.subr.mxu0 0.0
        %1136 = vmatpush1.msra.mxu0 0.0
        %1137 = vmatprep.subr.mxu0 0.0
        %1138 = vmatpush1.msra.mxu0 0.0
        %1139 = vmatprep.subr.mxu0 0.0
        %1140 = vmatpush1.msra.mxu0 0.0
        %1141 = vmatprep.subr.mxu0 0.0
        %1142 = vmatpush1.msra.mxu0 0.0
        %1143 = vmatprep.subr.mxu0 0.0
        %1144 = vmatpush1.msra.mxu0 0.0
        %1145 = vmatprep.subr.mxu0 0.0
        %1146 = vmatpush1.msra.mxu0 0.0
        %1147 = vmatprep.subr.mxu0 0.0
        %1148 = vmatpush1.msra.mxu0 0.0
        %1149 = vmatprep.subr.mxu0 0.0
        %1150 = vmatpush1.msra.mxu0 0.0
        %1151 = vmatprep.subr.mxu0 0.0
        %1152 = vmatpush1.msra.mxu0 0.0
        %1153 = vmatprep.subr.mxu0 0.0
        %1154 = vmatpush1.msra.mxu0 0.0
        %1155 = vmatprep.subr.mxu0 0.0
        %1156 = vmatpush1.msra.mxu0 0.0
        %1157 = vmatprep.subr.mxu0 0.0
        %1158 = vmatpush1.msra.mxu0 0.0
        %1159 = vmatprep.subr.mxu0 0.0
        %1160 = vmatpush1.msra.mxu0 0.0
        %1161 = vmatprep.subr.mxu0 0.0
        %1162 = vmatpush1.msra.mxu0 %v1129
        %1163 = vmatprep.subr.mxu0 0.0
        %1164 = vmatpush2.msra.mxu0 0.0
        %1165 = vmatprep.subr.mxu0 0.0
        %1166 = vmatpush2.msra.mxu0 0.0
        %1167 = vmatprep.subr.mxu0 0.0
        %1168 = vmatpush2.msra.mxu0 0.0
        %1169 = vmatprep.subr.mxu0 0.0
        %1170 = vmatpush2.msra.mxu0 0.0
        %1171 = vmatprep.subr.mxu0 0.0
        %1172 = vmatpush2.msra.mxu0 0.0
        %1173 = vmatprep.subr.mxu0 0.0
        %1174 = vmatpush2.msra.mxu0 0.0
        %1175 = vmatprep.subr.mxu0 0.0
        %1176 = vmatpush2.msra.mxu0 0.0
        %1177 = vmatprep.subr.mxu0 0.0
        %1178 = vmatpush2.msra.mxu0 0.0
        %1179 = vmatprep.subr.mxu0 0.0
        %1180 = vmatpush2.msra.mxu0 0.0
        %1181 = vmatprep.subr.mxu0 0.0
        %1182 = vmatpush2.msra.mxu0 0.0
        %1183 = vmatprep.subr.mxu0 0.0
        %1184 = vmatpush2.msra.mxu0 0.0
        %1185 = vmatprep.subr.mxu0 0.0
        %1186 = vmatpush2.msra.mxu0 0.0
        %1187 = vmatprep.subr.mxu0 0.0
        %1188 = vmatpush2.msra.mxu0 0.0
        %1189 = vmatprep.subr.mxu0 0.0
        %1190 = vmatpush2.msra.mxu0 0.0
        %1191 = vmatprep.subr.mxu0 0.0
        %1192 = vmatpush2.msra.mxu0 0.0
        %1193 = vmatprep.subr.mxu0 0.0
        %1194 = vmatpush2.msra.mxu0 0.0
        %1195 = vmatprep.mubr.f32.mxu0 0.0
        %1196 = vmatmul.mubr.f32.gmra.mxu0 %v1126
        %v1197 = vpop.f32.mrf.mxu0
        %v1198 = vadd.f32 %v1123, %v1197
        %v1199 = vpop.f32.mrf.mxu0
        %1200 = vdwg.mxu0
        %v1201 = vadd.f32 %v1198, %v395
        %v1202 = vrcp.pop %v1044
        %v1204 = vlaneseq
        %v1205 = vshrl.u32 %v1204, 7
        %v1206 = vsub.s32 0, %v1205
        %v1207 = vrot.slane %v1202, %v1206
        %v1208 = vlaneseq
        %v1209 = vshrl.u32 %v1208, 7
        %v1210 = vsub.s32 1, %v1209
        %v1211 = vrot.slane %v1202, %v1210
        %v1212 = vlaneseq
        %v1213 = vshrl.u32 %v1212, 7
        %v1214 = vsub.s32 2, %v1213
        %v1215 = vrot.slane %v1202, %v1214
        %v1216 = vlaneseq
        %v1217 = vshrl.u32 %v1216, 7
        %v1218 = vsub.s32 3, %v1217
        %v1219 = vrot.slane %v1202, %v1218
        %v1220 = vlaneseq
        %v1221 = vshrl.u32 %v1220, 7
        %v1222 = vsub.s32 4, %v1221
        %v1223 = vrot.slane %v1202, %v1222
        %v1224 = vlaneseq
        %v1225 = vshrl.u32 %v1224, 7
        %v1226 = vsub.s32 5, %v1225
        %v1227 = vrot.slane %v1202, %v1226
        %v1228 = vlaneseq
        %v1229 = vshrl.u32 %v1228, 7
        %v1230 = vsub.s32 6, %v1229
        %v1231 = vrot.slane %v1202, %v1230
        %v1232 = vlaneseq
        %v1233 = vshrl.u32 %v1232, 7
        %v1234 = vsub.s32 7, %v1233
        %v1235 = vrot.slane %v1202, %v1234
        %v1244 = vmul.f32 %v867, %v1207
        %v1245 = vmul.f32 %v869, %v1207
        %v1246 = vmul.f32 %v871, %v1211
        %v1247 = vmul.f32 %v873, %v1211
        %v1248 = vmul.f32 %v875, %v1215
        %v1249 = vmul.f32 %v877, %v1215
        %v1250 = vmul.f32 %v879, %v1219
        %v1251 = vmul.f32 %v881, %v1219
        %v1252 = vmul.f32 %v883, %v1223
        %v1253 = vmul.f32 %v885, %v1223
        %v1254 = vmul.f32 %v887, %v1227
        %v1255 = vmul.f32 %v889, %v1227
        %v1256 = vmul.f32 %v891, %v1231
        %v1257 = vmul.f32 %v893, %v1231
        %v1258 = vmul.f32 %v895, %v1235
        %v1259 = vmul.f32 %v897, %v1235
        %1260 = vst.msk [vmem:[%s367] sm:$0xff] %vm632, %v1201
        %1277 = vset.pattern.permute.xlu0 0
        %1278 = vperm.xlu0 %1277, %v1244
        %v1279 = vpop.permute.xlu0 %1278
        %1280 = vset.pattern.permute.xlu0 0
        %1281 = vperm.xlu0 %1280, %v1245
        %v1282 = vpop.permute.xlu0 %1281
        %1283 = vset.pattern.permute.xlu0 0
        %1284 = vperm.xlu0 %1283, %v1246
        %v1285 = vpop.permute.xlu0 %1284
        %1286 = vset.pattern.permute.xlu0 0
        %1287 = vperm.xlu0 %1286, %v1247
        %v1288 = vpop.permute.xlu0 %1287
        %1289 = vset.pattern.permute.xlu0 0
        %1290 = vperm.xlu0 %1289, %v1248
        %v1291 = vpop.permute.xlu0 %1290
        %1292 = vset.pattern.permute.xlu0 0
        %1293 = vperm.xlu0 %1292, %v1249
        %v1294 = vpop.permute.xlu0 %1293
        %1295 = vset.pattern.permute.xlu0 0
        %1296 = vperm.xlu0 %1295, %v1250
        %v1297 = vpop.permute.xlu0 %1296
        %1298 = vset.pattern.permute.xlu0 0
        %1299 = vperm.xlu0 %1298, %v1251
        %v1300 = vpop.permute.xlu0 %1299
        %1301 = vset.pattern.permute.xlu0 0
        %1302 = vperm.xlu0 %1301, %v1252
        %v1303 = vpop.permute.xlu0 %1302
        %1304 = vset.pattern.permute.xlu0 0
        %1305 = vperm.xlu0 %1304, %v1253
        %v1306 = vpop.permute.xlu0 %1305
        %1307 = vset.pattern.permute.xlu0 0
        %1308 = vperm.xlu0 %1307, %v1254
        %v1309 = vpop.permute.xlu0 %1308
        %1310 = vset.pattern.permute.xlu0 0
        %1311 = vperm.xlu0 %1310, %v1255
        %v1312 = vpop.permute.xlu0 %1311
        %1313 = vset.pattern.permute.xlu0 0
        %1314 = vperm.xlu0 %1313, %v1256
        %v1315 = vpop.permute.xlu0 %1314
        %1316 = vset.pattern.permute.xlu0 0
        %1317 = vperm.xlu0 %1316, %v1257
        %v1318 = vpop.permute.xlu0 %1317
        %1319 = vset.pattern.permute.xlu0 0
        %1320 = vperm.xlu0 %1319, %v1258
        %v1321 = vpop.permute.xlu0 %1320
        %1322 = vset.pattern.permute.xlu0 0
        %1323 = vperm.xlu0 %1322, %v1259
        %v1324 = vpop.permute.xlu0 %1323
        %v1325 = vlaneseq
        %v1326 = vshrl.u32 %v1325, 7
        %v1327 = vsub.s32 %v715, %v1326
        %v1328 = vrot.slane %v1279, %v1327
        %v1329 = vlaneseq
        %v1330 = vshrl.u32 %v1329, 7
        %v1331 = vsub.s32 %v720, %v1330
        %v1332 = vrot.slane %v1282, %v1331
        %v1333 = vsel %vm725, %v1332, %v1328
        %v1334 = vlaneseq
        %v1335 = vshrl.u32 %v1334, 7
        %v1336 = vsub.s32 %v715, %v1335
        %v1337 = vrot.slane %v1285, %v1336
        %v1338 = vlaneseq
        %v1339 = vshrl.u32 %v1338, 7
        %v1340 = vsub.s32 %v720, %v1339
        %v1341 = vrot.slane %v1288, %v1340
        %v1342 = vsel %vm725, %v1341, %v1337
        %v1343 = vlaneseq
        %v1344 = vshrl.u32 %v1343, 7
        %v1345 = vsub.s32 %v715, %v1344
        %v1346 = vrot.slane %v1291, %v1345
        %v1347 = vlaneseq
        %v1348 = vshrl.u32 %v1347, 7
        %v1349 = vsub.s32 %v720, %v1348
        %v1350 = vrot.slane %v1294, %v1349
        %v1351 = vsel %vm725, %v1350, %v1346
        %v1352 = vlaneseq
        %v1353 = vshrl.u32 %v1352, 7
        %v1354 = vsub.s32 %v715, %v1353
        %v1355 = vrot.slane %v1297, %v1354
        %v1356 = vlaneseq
        %v1357 = vshrl.u32 %v1356, 7
        %v1358 = vsub.s32 %v720, %v1357
        %v1359 = vrot.slane %v1300, %v1358
        %v1360 = vsel %vm725, %v1359, %v1355
        %v1361 = vlaneseq
        %v1362 = vshrl.u32 %v1361, 7
        %v1363 = vsub.s32 %v715, %v1362
        %v1364 = vrot.slane %v1303, %v1363
        %v1365 = vlaneseq
        %v1366 = vshrl.u32 %v1365, 7
        %v1367 = vsub.s32 %v720, %v1366
        %v1368 = vrot.slane %v1306, %v1367
        %v1369 = vsel %vm725, %v1368, %v1364
        %v1370 = vlaneseq
        %v1371 = vshrl.u32 %v1370, 7
        %v1372 = vsub.s32 %v715, %v1371
        %v1373 = vrot.slane %v1309, %v1372
        %v1374 = vlaneseq
        %v1375 = vshrl.u32 %v1374, 7
        %v1376 = vsub.s32 %v720, %v1375
        %v1377 = vrot.slane %v1312, %v1376
        %v1378 = vsel %vm725, %v1377, %v1373
        %v1379 = vlaneseq
        %v1380 = vshrl.u32 %v1379, 7
        %v1381 = vsub.s32 %v715, %v1380
        %v1382 = vrot.slane %v1315, %v1381
        %v1383 = vlaneseq
        %v1384 = vshrl.u32 %v1383, 7
        %v1385 = vsub.s32 %v720, %v1384
        %v1386 = vrot.slane %v1318, %v1385
        %v1387 = vsel %vm725, %v1386, %v1382
        %v1388 = vlaneseq
        %v1389 = vshrl.u32 %v1388, 7
        %v1390 = vsub.s32 %v715, %v1389
        %v1391 = vrot.slane %v1321, %v1390
        %v1392 = vlaneseq
        %v1393 = vshrl.u32 %v1392, 7
        %v1394 = vsub.s32 %v720, %v1393
        %v1395 = vrot.slane %v1324, %v1394
        %v1396 = vsel %vm725, %v1395, %v1391
        %v1397 = vsel %vm790, %v1342, %v1333
        %v1398 = vsel %vm792, %v1351, %v1397
        %v1399 = vsel %vm794, %v1360, %v1398
        %v1400 = vsel %vm796, %v1369, %v1399
        %v1401 = vsel %vm798, %v1378, %v1400
        %v1402 = vsel %vm800, %v1387, %v1401
        %v1403 = vsel %vm802, %v1396, %v1402
        %1405 = vst.msk [vmem:[%s374] sm:$0xff] %vm805, %v1403
        %s1406 = sand.u32 %s230, 1
        %s1407 = scalar_lea.sflag [#allocation4], %s1406
        %s1408 = sand.u32 %s230, 1
        %s1409 = smul.addr %s1408, 8
        %s1410 = scalar_lea.vmem [#allocation3], %s1409
        %s1411 = sand.u32 %s258, 1
        %s1412 = scalar_lea.sflag [#allocation6], %s1411
        %s1413 = sand.u32 %s258, 1
        %s1414 = smul.addr %s1413, 8
        %s1415 = scalar_lea.vmem [#allocation5], %s1414
        // Predicated region
        $region53: #{tpu_custom_call.1} parent=51 // pred_check
          %p1416 = pneg %p240
        $region54: #{tpu_custom_call.1} parent=51 // pred_check_branch
          %1418 = sbr.rel (%p1416) target = $region56
        $region55: #{tpu_custom_call.1} parent=51 // pred_region
          %s1420 = ssub.s32 128, 128
          %1421 = vsyncadd %s1407, %s1420
          %s1422 = sadd.s32 %s33, %s32
          %s1423 = smul.addr %s1422, 128
          %s1424 = scalar_lea.hbm %s8, %s1423
          %s1426 = sshll.u32 %s1410, 4
          %s1427 = int_to_ptr.vmem [resolvable:$true] %s1426
          %1429 = dma.vmem_to_hbm [thread:$0]  %s1427, 128, %s1424, %s1407
        $region56: #{tpu_custom_call.1} parent=51 // pred_fallthru
          _
        // Predicated region
        $region57: #{tpu_custom_call.1} parent=51 // pred_check
          %p1430 = pneg %p268
        $region58: #{tpu_custom_call.1} parent=51 // pred_check_branch
          %1432 = sbr.rel (%p1430) target = $region60
        $region59: #{tpu_custom_call.1} parent=51 // pred_region
          %s1434 = ssub.s32 128, 128
          %1435 = vsyncadd %s1412, %s1434
          %s1436 = sadd.s32 %s33, %s32
          %s1437 = smul.addr %s1436, 128
          %s1438 = scalar_lea.hbm %s9, %s1437
          %s1440 = sshll.u32 %s1415, 4
          %s1441 = int_to_ptr.vmem [resolvable:$true] %s1440
          %1443 = dma.vmem_to_hbm [thread:$0]  %s1441, 128, %s1438, %s1412
        $region60: #{tpu_custom_call.1} parent=51 // pred_fallthru
          _
      $region52: #{tpu_custom_call.1} parent=5 // pred_fallthru
        _
      %p1444 = scmp.le.s32.totalorder 2, %s23
      // Predicated region
      $region61: #{tpu_custom_call.1} parent=5 // pred_check
        %p1445 = pneg %p1444
      $region62: #{tpu_custom_call.1} parent=5 // pred_check_branch
        %1447 = sbr.rel (%p1445) target = $region64
      $region63: #{tpu_custom_call.1} parent=5 // pred_region
        %s1448 = ssub.s32 %s23, 2
        // Predicated region
        $region65: #{tpu_custom_call.1} parent=63 // pred_check
          %p1449 = pneg %p246
        $region66: #{tpu_custom_call.1} parent=63 // pred_check_branch
          %1451 = sbr.rel (%p1449) target = $region68
        $region67: #{tpu_custom_call.1} parent=63 // pred_region
          %s1452 = sand.u32 %s231, 1
          %s1453 = scalar_lea.sflag [#allocation4], %s1452
          %s1454 = sand.u32 %s231, 1
          %s1455 = smul.addr %s1454, 8
          %s1456 = scalar_lea.vmem [#allocation3], %s1455
          %1457 = dma.done %s1453, 128
        $region68: #{tpu_custom_call.1} parent=63 // pred_fallthru
          _
        // Predicated region
        $region69: #{tpu_custom_call.1} parent=63 // pred_check
          %p1458 = pneg %p274
        $region70: #{tpu_custom_call.1} parent=63 // pred_check_branch
          %1460 = sbr.rel (%p1458) target = $region72
        $region71: #{tpu_custom_call.1} parent=63 // pred_region
          %s1461 = sand.u32 %s259, 1
          %s1462 = scalar_lea.sflag [#allocation6], %s1461
          %s1463 = sand.u32 %s259, 1
          %s1464 = smul.addr %s1463, 8
          %s1465 = scalar_lea.vmem [#allocation5], %s1464
          %1466 = dma.done %s1462, 128
        $region72: #{tpu_custom_call.1} parent=63 // pred_fallthru
          _
      $region64: #{tpu_custom_call.1} parent=5 // pred_fallthru
        _
    $region6: #{tpu_custom_call.1} parent=1 // loop_footer
      %s27 = sadd.s32 1, %s23
    $region7: #{tpu_custom_call.1} parent=1 // loop_footer_branch
      %22 = sbr.rel target = $region3
    $region8: #{tpu_custom_call.1} parent=1 // loop_exit
      _
    %1467 = vsyncpa [#allocation4], 1
    %s1468 = scalar_lea.sflag [#allocation4], 1
    %1469 = vsyncpa %s1468, 1
    %1470 = vsyncpa [#allocation6], 1
    %s1471 = scalar_lea.sflag [#allocation6], 1
    %1472 = vsyncpa %s1471, 1

// kernel: tpu_custom_call.1
$region0: #{tpu_custom_call.1}
  #allocation0 [shape = 'u32[]', space=smem, size = 0x4, offset = 0x4, fixed_abs, tag = 'smem constant byte address 0x4 - core index']
  #allocation1 [shape = 'u32[144,128]{1,0:T(1,128)}', space=vmem, size = 0x12000, scoped, tag = 'internal scratch']
  #allocation2 [shape = 'f32[1]{0:T(128)S(6)}', space=smem, size = 0x200, scoped, tag = 'scoped memory for tpu_custom_call.1']
  %s0 = inlined_call_operand.vmem [shape: f32[2,16,4], index: 0, kind: input, shape index: {}]
  %s1 = inlined_call_operand.vmem [shape: f32[2,8,32], index: 1, kind: input, shape index: {}]
  %s2 = inlined_call_operand.vmem [shape: f32[4,32], index: 2, kind: input, shape index: {}]
  %s3 = inlined_call_operand.vmem [shape: f32[1,32], index: 3, kind: input, shape index: {}]
  %s4 = inlined_call_operand.vmem [shape: f32[1,32], index: 4, kind: input, shape index: {}]
  %s5 = inlined_call_operand.<no memory space> [shape: f32[1], index: 5, kind: input, shape index: {}]
  %s6 = inlined_call_operand.vmem [shape: f32[4,32], index: 6, kind: input, shape index: {}]
  %s7 = inlined_call_operand.vmem [shape: f32[1,32], index: 7, kind: input, shape index: {}]
  %s8 = inlined_call_operand.hbm [shape: f32[2,8,32], index: 8, kind: output, shape index: {0}]
  %s9 = inlined_call_operand.hbm [shape: f32[2,8,16], index: 9, kind: output, shape index: {1}]
  %10 = xla_tuple %s8, %s9
  %s11 = sld [smem:[#allocation0]]
  $region73: #{tpu_custom_call.1} parent=0
    _
  %s13 = ssub.s32 1, %s11
  %s14 = scalar_select 0, %s13, %s11
  %15 = sst [smem:[#allocation2]] %s5
  $region1: #{tpu_custom_call.1} parent=0
    #allocation3 [shape = 'u8[8192]{0}', space=vmem, size = 0x2000, scoped, tag = 'output window, operand 0']
    #allocation4 [shape = 's32[2]{0}', space=sflag, size = 0x8, scoped, tag = 'scoped memory for tpu_custom_call.1']
    #allocation5 [shape = 'u8[8192]{0}', space=vmem, size = 0x2000, scoped, tag = 'output window, operand 1']
    #allocation6 [shape = 's32[2]{0}', space=sflag, size = 0x8, scoped, tag = 'scoped memory for tpu_custom_call.1']
    %16 = vsyncpa [#allocation4], 0
    %s17 = scalar_lea.sflag [#allocation4], 1
    %18 = vsyncpa %s17, 0
    %19 = vsyncpa [#allocation6], 0
    %s20 = scalar_lea.sflag [#allocation6], 1
    %21 = vsyncpa %s20, 0
    loop: start=0, step=1, limit=4
    $region2: #{tpu_custom_call.1} parent=1 // loop_pre_header
      _
    $region3: #{tpu_custom_call.1} parent=1 // loop_header
      %s23 = sphi 0, %s27
      %p24 = scmp.ge.s32.totalorder %s23, 4
      %s30 = sphi 0, %s42
      %s31 = sphi 0, %s38
      %s32 = sphi 0, %s30
      %s33 = sphi 0, %s31
      %s34 = sphi 0, %s32
      %s35 = sphi 0, %s33
      %s45 = sphi 0, %s47
      %s48 = sphi 0, %s45
      %s49 = sphi 0, %s48
      %s65 = sphi 0, %s49
      %s73 = sphi 0, %s75
      %s76 = sphi 0, %s73
      %s77 = sphi 0, %s76
      %s93 = sphi 0, %s77
      %s97 = sphi 0, %s97
      %s99 = sphi 0, %s97
      %s100 = sphi 0, %s99
      %s114 = sphi 0, %s100
      %s118 = sphi 0, %s118
      %s120 = sphi 0, %s118
      %s121 = sphi 0, %s120
      %s135 = sphi 0, %s121
      %s139 = sphi 0, %s139
      %s141 = sphi 0, %s139
      %s142 = sphi 0, %s141
      %s156 = sphi 0, %s142
      %s160 = sphi 0, %s160
      %s162 = sphi 0, %s160
      %s163 = sphi 0, %s162
      %s177 = sphi 0, %s163
      %s181 = sphi 0, %s181
      %s183 = sphi 0, %s181
      %s184 = sphi 0, %s183
      %s198 = sphi 0, %s184
      %s202 = sphi 0, %s202
      %s204 = sphi 0, %s202
      %s205 = sphi 0, %s204
      %s219 = sphi 0, %s205
      %s227 = sphi 0, %s229
      %s230 = sphi 0, %s227
      %s231 = sphi 0, %s230
      %s247 = sphi 0, %s231
      %s255 = sphi 0, %s257
      %s258 = sphi 0, %s255
      %s259 = sphi 0, %s258
      %s275 = sphi 0, %s259
    $region4: #{tpu_custom_call.1} parent=1 // loop_header_branch
      %26 = sbr.rel (%p24) target = $region8
    $region5: #{tpu_custom_call.1} parent=1 // loop_body
      %s28 = ssub.s32 %s23, 1
      %s29 = ssub.s32 %s23, 2
      %s36 = sadd.s32 1, %s31
      %p37 = scmp.ge.s32.totalorder %s36, 1
      %s38 = scalar_select %p37, 0, %s36
      %s39 = sadd.s32 1, %s30
      %s40 = scalar_select %p37, %s39, %s30
      %p41 = scmp.ge.s32.totalorder %s40, 2
      %s42 = scalar_select %p41, 0, %s40
      %s43 = ssub.s32 %s30, %s42
      %p44 = scmp.eq.s32.totalorder %s43, 0
      %s46 = sadd.s32 %s45, 1
      %s47 = scalar_select %p44, %s45, %s46
      %p50 = pneg %p44
      %p51 = scmp.eq.s32.totalorder %s23, 1
      %p52 = por %p50, %p51
      %p53 = scmp.ne.s32.totalorder %s45, %s48
      %p54 = scmp.eq.s32.totalorder %s23, 0
      %p55 = por %p53, %p54
      %p56 = scmp.ne.s32.totalorder %s45, %s48
      %p57 = scmp.eq.s32.totalorder %s28, 1
      %p58 = por %p56, %p57
      %p59 = scmp.ne.s32.totalorder %s48, %s49
      %p60 = scmp.eq.s32.totalorder %s28, 0
      %p61 = por %p59, %p60
      %p62 = scmp.ne.s32.totalorder %s48, %s49
      %p63 = scmp.eq.s32.totalorder %s29, 1
      %p64 = por %p62, %p63
      %p66 = scmp.ne.s32.totalorder %s49, %s65
      %p67 = scmp.eq.s32.totalorder %s29, 0
      %p68 = por %p66, %p67
      %s69 = ssub.s32 %s30, %s42
      %s70 = ssub.s32 %s31, %s38
      %s71 = sor.u32 %s69, %s70
      %p72 = scmp.eq.s32.totalorder %s71, 0
      %s74 = sadd.s32 %s73, 1
      %s75 = scalar_select %p72, %s73, %s74
      %p78 = pneg %p72
      %p79 = scmp.eq.s32.totalorder %s23, 1
      %p80 = por %p78, %p79
      %p81 = scmp.ne.s32.totalorder %s73, %s76
      %p82 = scmp.eq.s32.totalorder %s23, 0
      %p83 = por %p81, %p82
      %p84 = scmp.ne.s32.totalorder %s73, %s76
      %p85 = scmp.eq.s32.totalorder %s28, 1
      %p86 = por %p84, %p85
      %p87 = scmp.ne.s32.totalorder %s76, %s77
      %p88 = scmp.eq.s32.totalorder %s28, 0
      %p89 = por %p87, %p88
      %p90 = scmp.ne.s32.totalorder %s76, %s77
      %p91 = scmp.eq.s32.totalorder %s29, 1
      %p92 = por %p90, %p91
      %p94 = scmp.ne.s32.totalorder %s77, %s93
      %p95 = scmp.eq.s32.totalorder %s29, 0
      %p96 = por %p94, %p95
      %s98 = sadd.s32 %s97, 1
      %p101 = scmp.eq.s32.totalorder %s23, 1
      %p102 = scmp.ne.s32.totalorder %s97, %s99
      %p103 = scmp.eq.s32.totalorder %s23, 0
      %p104 = por %p102, %p103
      %p105 = scmp.ne.s32.totalorder %s97, %s99
      %p106 = scmp.eq.s32.totalorder %s28, 1
      %p107 = por %p105, %p106
      %p108 = scmp.ne.s32.totalorder %s99, %s100
      %p109 = scmp.eq.s32.totalorder %s28, 0
      %p110 = por %p108, %p109
      %p111 = scmp.ne.s32.totalorder %s99, %s100
      %p112 = scmp.eq.s32.totalorder %s29, 1
      %p113 = por %p111, %p112
      %p115 = scmp.ne.s32.totalorder %s100, %s114
      %p116 = scmp.eq.s32.totalorder %s29, 0
      %p117 = por %p115, %p116
      %s119 = sadd.s32 %s118, 1
      %p122 = scmp.eq.s32.totalorder %s23, 1
      %p123 = scmp.ne.s32.totalorder %s118, %s120
      %p124 = scmp.eq.s32.totalorder %s23, 0
      %p125 = por %p123, %p124
      %p126 = scmp.ne.s32.totalorder %s118, %s120
      %p127 = scmp.eq.s32.totalorder %s28, 1
      %p128 = por %p126, %p127
      %p129 = scmp.ne.s32.totalorder %s120, %s121
      %p130 = scmp.eq.s32.totalorder %s28, 0
      %p131 = por %p129, %p130
      %p132 = scmp.ne.s32.totalorder %s120, %s121
      %p133 = scmp.eq.s32.totalorder %s29, 1
      %p134 = por %p132, %p133
      %p136 = scmp.ne.s32.totalorder %s121, %s135
      %p137 = scmp.eq.s32.totalorder %s29, 0
      %p138 = por %p136, %p137
      %s140 = sadd.s32 %s139, 1
      %p143 = scmp.eq.s32.totalorder %s23, 1
      %p144 = scmp.ne.s32.totalorder %s139, %s141
      %p145 = scmp.eq.s32.totalorder %s23, 0
      %p146 = por %p144, %p145
      %p147 = scmp.ne.s32.totalorder %s139, %s141
      %p148 = scmp.eq.s32.totalorder %s28, 1
      %p149 = por %p147, %p148
      %p150 = scmp.ne.s32.totalorder %s141, %s142
      %p151 = scmp.eq.s32.totalorder %s28, 0
      %p152 = por %p150, %p151
      %p153 = scmp.ne.s32.totalorder %s141, %s142
      %p154 = scmp.eq.s32.totalorder %s29, 1
      %p155 = por %p153, %p154
      %p157 = scmp.ne.s32.totalorder %s142, %s156
      %p158 = scmp.eq.s32.totalorder %s29, 0
      %p159 = por %p157, %p158
      %s161 = sadd.s32 %s160, 1
      %p164 = scmp.eq.s32.totalorder %s23, 1
      %p165 = scmp.ne.s32.totalorder %s160, %s162
      %p166 = scmp.eq.s32.totalorder %s23, 0
      %p167 = por %p165, %p166
      %p168 = scmp.ne.s32.totalorder %s160, %s162
      %p169 = scmp.eq.s32.totalorder %s28, 1
      %p170 = por %p168, %p169
      %p171 = scmp.ne.s32.totalorder %s162, %s163
      %p172 = scmp.eq.s32.totalorder %s28, 0
      %p173 = por %p171, %p172
      %p174 = scmp.ne.s32.totalorder %s162, %s163
      %p175 = scmp.eq.s32.totalorder %s29, 1
      %p176 = por %p174, %p175
      %p178 = scmp.ne.s32.totalorder %s163, %s177
      %p179 = scmp.eq.s32.totalorder %s29, 0
      %p180 = por %p178, %p179
      %s182 = sadd.s32 %s181, 1
      %p185 = scmp.eq.s32.totalorder %s23, 1
      %p186 = scmp.ne.s32.totalorder %s181, %s183
      %p187 = scmp.eq.s32.totalorder %s23, 0
      %p188 = por %p186, %p187
      %p189 = scmp.ne.s32.totalorder %s181, %s183
      %p190 = scmp.eq.s32.totalorder %s28, 1
      %p191 = por %p189, %p190
      %p192 = scmp.ne.s32.totalorder %s183, %s184
      %p193 = scmp.eq.s32.totalorder %s28, 0
      %p194 = por %p192, %p193
      %p195 = scmp.ne.s32.totalorder %s183, %s184
      %p196 = scmp.eq.s32.totalorder %s29, 1
      %p197 = por %p195, %p196
      %p199 = scmp.ne.s32.totalorder %s184, %s198
      %p200 = scmp.eq.s32.totalorder %s29, 0
      %p201 = por %p199, %p200
      %s203 = sadd.s32 %s202, 1
      %p206 = scmp.eq.s32.totalorder %s23, 1
      %p207 = scmp.ne.s32.totalorder %s202, %s204
      %p208 = scmp.eq.s32.totalorder %s23, 0
      %p209 = por %p207, %p208
      %p210 = scmp.ne.s32.totalorder %s202, %s204
      %p211 = scmp.eq.s32.totalorder %s28, 1
      %p212 = por %p210, %p211
      %p213 = scmp.ne.s32.totalorder %s204, %s205
      %p214 = scmp.eq.s32.totalorder %s28, 0
      %p215 = por %p213, %p214
      %p216 = scmp.ne.s32.totalorder %s204, %s205
      %p217 = scmp.eq.s32.totalorder %s29, 1
      %p218 = por %p216, %p217
      %p220 = scmp.ne.s32.totalorder %s205, %s219
      %p221 = scmp.eq.s32.totalorder %s29, 0
      %p222 = por %p220, %p221
      %s223 = ssub.s32 %s30, %s42
      %s224 = ssub.s32 %s31, %s38
      %s225 = sor.u32 %s223, %s224
      %p226 = scmp.eq.s32.totalorder %s225, 0
      %s228 = sadd.s32 %s227, 1
      %s229 = scalar_select %p226, %s227, %s228
      %p232 = pneg %p226
      %p233 = scmp.eq.s32.totalorder %s23, 1
      %p234 = por %p232, %p233
      %p235 = scmp.ne.s32.totalorder %s227, %s230
      %p236 = scmp.eq.s32.totalorder %s23, 0
      %p237 = por %p235, %p236
      %p238 = scmp.ne.s32.totalorder %s227, %s230
      %p239 = scmp.eq.s32.totalorder %s28, 1
      %p240 = por %p238, %p239
      %p241 = scmp.ne.s32.totalorder %s230, %s231
      %p242 = scmp.eq.s32.totalorder %s28, 0
      %p243 = por %p241, %p242
      %p244 = scmp.ne.s32.totalorder %s230, %s231
      %p245 = scmp.eq.s32.totalorder %s29, 1
      %p246 = por %p244, %p245
      %p248 = scmp.ne.s32.totalorder %s231, %s247
      %p249 = scmp.eq.s32.totalorder %s29, 0
      %p250 = por %p248, %p249
      %s251 = ssub.s32 %s30, %s42
      %s252 = ssub.s32 %s31, %s38
      %s253 = sor.u32 %s251, %s252
      %p254 = scmp.eq.s32.totalorder %s253, 0
      %s256 = sadd.s32 %s255, 1
      %s257 = scalar_select %p254, %s255, %s256
      %p260 = pneg %p254
      %p261 = scmp.eq.s32.totalorder %s23, 1
      %p262 = por %p260, %p261
      %p263 = scmp.ne.s32.totalorder %s255, %s258
      %p264 = scmp.eq.s32.totalorder %s23, 0
      %p265 = por %p263, %p264
      %p266 = scmp.ne.s32.totalorder %s255, %s258
      %p267 = scmp.eq.s32.totalorder %s28, 1
      %p268 = por %p266, %p267
      %p269 = scmp.ne.s32.totalorder %s258, %s259
      %p270 = scmp.eq.s32.totalorder %s28, 0
      %p271 = por %p269, %p270
      %p272 = scmp.ne.s32.totalorder %s258, %s259
      %p273 = scmp.eq.s32.totalorder %s29, 1
      %p274 = por %p272, %p273
      %p276 = scmp.ne.s32.totalorder %s259, %s275
      %p277 = scmp.eq.s32.totalorder %s29, 0
      %p278 = por %p276, %p277
      %p279 = scmp.le.s32.totalorder 1, %s23
      %p280 = scmp.lt.s32.totalorder %s23, 3
      %p281 = pnand %p279, %p280
      %p282 = pneg %p281
      // Predicated region
      $region9: #{tpu_custom_call.1} parent=5 // pred_check
        _
      $region10: #{tpu_custom_call.1} parent=5 // pred_check_branch
        %284 = sbr.rel (%p281) target = $region12
      $region11: #{tpu_custom_call.1} parent=5 // pred_region
        %s285 = ssub.s32 %s23, 1
        // Predicated region
        $region13: #{tpu_custom_call.1} parent=11 // pred_check
          %p286 = pneg %p110
        $region14: #{tpu_custom_call.1} parent=11 // pred_check_branch
          %288 = sbr.rel (%p286) target = $region16
        $region15: #{tpu_custom_call.1} parent=11 // pred_region
          _
        $region16: #{tpu_custom_call.1} parent=11 // pred_fallthru
          _
        // Predicated region
        $region17: #{tpu_custom_call.1} parent=11 // pred_check
          %p289 = pneg %p131
        $region18: #{tpu_custom_call.1} parent=11 // pred_check_branch
          %291 = sbr.rel (%p289) target = $region20
        $region19: #{tpu_custom_call.1} parent=11 // pred_region
          _
        $region20: #{tpu_custom_call.1} parent=11 // pred_fallthru
          _
        // Predicated region
        $region21: #{tpu_custom_call.1} parent=11 // pred_check
          %p292 = pneg %p152
        $region22: #{tpu_custom_call.1} parent=11 // pred_check_branch
          %294 = sbr.rel (%p292) target = $region24
        $region23: #{tpu_custom_call.1} parent=11 // pred_region
          _
        $region24: #{tpu_custom_call.1} parent=11 // pred_fallthru
          _
        // Predicated region
        $region25: #{tpu_custom_call.1} parent=11 // pred_check
          %p295 = pneg %p173
        $region26: #{tpu_custom_call.1} parent=11 // pred_check_branch
          %297 = sbr.rel (%p295) target = $region28
        $region27: #{tpu_custom_call.1} parent=11 // pred_region
          _
        $region28: #{tpu_custom_call.1} parent=11 // pred_fallthru
          _
        // Predicated region
        $region29: #{tpu_custom_call.1} parent=11 // pred_check
          %p298 = pneg %p194
        $region30: #{tpu_custom_call.1} parent=11 // pred_check_branch
          %300 = sbr.rel (%p298) target = $region32
        $region31: #{tpu_custom_call.1} parent=11 // pred_region
          _
        $region32: #{tpu_custom_call.1} parent=11 // pred_fallthru
          _
        // Predicated region
        $region33: #{tpu_custom_call.1} parent=11 // pred_check
          %p301 = pneg %p215
        $region34: #{tpu_custom_call.1} parent=11 // pred_check_branch
          %303 = sbr.rel (%p301) target = $region36
        $region35: #{tpu_custom_call.1} parent=11 // pred_region
          _
        $region36: #{tpu_custom_call.1} parent=11 // pred_fallthru
          _
      $region12: #{tpu_custom_call.1} parent=5 // pred_fallthru
        _
      %p304 = scmp.lt.s32.totalorder %s23, 2
      // Predicated region
      $region37: #{tpu_custom_call.1} parent=5 // pred_check
        %p305 = pneg %p304
      $region38: #{tpu_custom_call.1} parent=5 // pred_check_branch
        %307 = sbr.rel (%p305) target = $region40
      $region39: #{tpu_custom_call.1} parent=5 // pred_region
        // Predicated region
        $region41: #{tpu_custom_call.1} parent=39 // pred_check
          %p308 = pneg %p55
        $region42: #{tpu_custom_call.1} parent=39 // pred_check_branch
          %310 = sbr.rel (%p308) target = $region44
        $region43: #{tpu_custom_call.1} parent=39 // pred_region
          %p311 = scmp.lt.s32.totalorder %s30, 1
          %s312 = scalar_select %p311, %s30, 1
          %s313 = smul.addr %s312, 2
          %s314 = smul.addr %s313, 8
          %s315 = scalar_lea.vmem %s0, %s314
        $region44: #{tpu_custom_call.1} parent=39 // pred_fallthru
          _
        // Predicated region
        $region45: #{tpu_custom_call.1} parent=39 // pred_check
          %p316 = pneg %p83
        $region46: #{tpu_custom_call.1} parent=39 // pred_check_branch
          %318 = sbr.rel (%p316) target = $region48
        $region47: #{tpu_custom_call.1} parent=39 // pred_region
          %p319 = scmp.lt.s32.totalorder %s30, 1
          %s320 = scalar_select %p319, %s30, 1
          %p321 = scmp.lt.s32.totalorder %s31, 0
          %s322 = scalar_select %p321, %s31, 0
          %s323 = sadd.s32 %s322, %s320
          %s324 = smul.addr %s323, 8
          %s325 = scalar_lea.vmem %s1, %s324
        $region48: #{tpu_custom_call.1} parent=39 // pred_fallthru
          _
      $region40: #{tpu_custom_call.1} parent=5 // pred_fallthru
        _
      %p326 = scmp.le.s32.totalorder 1, %s23
      %p327 = scmp.lt.s32.totalorder %s23, 3
      %p328 = pnand %p326, %p327
      %p329 = pneg %p328
      // Predicated region
      $region49: #{tpu_custom_call.1} parent=5 // pred_check
        _
      $region50: #{tpu_custom_call.1} parent=5 // pred_check_branch
        %331 = sbr.rel (%p328) target = $region52
      $region51: #{tpu_custom_call.1} parent=5 // pred_region
        %s332 = ssub.s32 %s23, 1
        %p333 = scmp.lt.s32.totalorder %s32, 1
        %s334 = scalar_select %p333, %s32, 1
        %s335 = smul.addr %s334, 2
        %s336 = smul.addr %s335, 8
        %s337 = scalar_lea.vmem %s0, %s336
        %p338 = pneg %p61
        %p339 = pneg %p58
        %p340 = scmp.lt.s32.totalorder %s32, 1
        %s341 = scalar_select %p340, %s32, 1
        %p342 = scmp.lt.s32.totalorder %s33, 0
        %s343 = scalar_select %p342, %s33, 0
        %s344 = sadd.s32 %s343, %s341
        %s345 = smul.addr %s344, 8
        %s346 = scalar_lea.vmem %s1, %s345
        %p347 = pneg %p89
        %p348 = pneg %p86
        %p349 = pneg %p110
        %p350 = pneg %p107
        %p351 = pneg %p131
        %p352 = pneg %p128
        %p353 = pneg %p152
        %p354 = pneg %p149
        %p355 = pneg %p173
        %p356 = pneg %p170
        %p357 = pneg %p194
        %p358 = pneg %p191
        %p359 = pneg %p215
        %p360 = pneg %p212
        %p361 = pneg %p243
        %p362 = pneg %p240
        %s363 = sand.u32 %s230, 1
        %s364 = scalar_lea.sflag [#allocation4], %s363
        %s365 = sand.u32 %s230, 1
        %s366 = smul.addr %s365, 8
        %s367 = scalar_lea.vmem [#allocation3], %s366
        %p368 = pneg %p271
        %p369 = pneg %p268
        %s370 = sand.u32 %s258, 1
        %s371 = scalar_lea.sflag [#allocation6], %s370
        %s372 = sand.u32 %s258, 1
        %s373 = smul.addr %s372, 8
        %s374 = scalar_lea.vmem [#allocation5], %s373
        %p375 = scmp.lt.s32.totalorder %s32, 1
        %s376 = scalar_select %p375, %s32, 1
        %s377 = smul.addr %s376, 2
        %s378 = smul.addr %s377, 8
        %s379 = scalar_lea.vmem %s0, %s378
        %p380 = scmp.lt.s32.totalorder %s32, 1
        %s381 = scalar_select %p380, %s32, 1
        %p382 = scmp.lt.s32.totalorder %s33, 0
        %s383 = scalar_select %p382, %s33, 0
        %s384 = sadd.s32 %s383, %s381
        %s385 = smul.addr %s384, 8
        %s386 = scalar_lea.vmem %s1, %s385
        %v387 = vld [vmem:[%s2] sm:$0xf]
        %v388 = vld [vmem:[%s3] sm:$0x1]
        %v389 = vld [vmem:[%s4] sm:$0x1]
        %s390 = sld [smem:[#allocation2]]
        %v391 = vld [vmem:[%s6] sm:$0xf]
        %v392 = vld [vmem:[%s7] sm:$0x1]
        %v393 = vld [vmem:[%s379] sm:$0xff]
        %v394 = vld [vmem:[%s379 + $0x8] sm:$0xff]
        %v395 = vld [vmem:[%s386] sm:$0xff]
        %v397 = vlaneseq
        %v398 = vshrl.u32 %v397, 7
        %v399 = vsub.s32 0, %v398
        %v400 = vrot.slane %v388, %v399
        %vm402 = vcmask 31744
        %v404 = vsel %vm402, %v393, 0
        %v407 = vsel %vm402, %v394, 0
        %vm409 = vcmask 1043456
        %v411 = vsel %vm409, %v387, 0
        %413 = vmatprep.subr.mxu0 0.0
        %414 = vmatpush1.msra.mxu0 0.0
        %415 = vmatprep.subr.mxu0 0.0
        %416 = vmatpush1.msra.mxu0 0.0
        %417 = vmatprep.subr.mxu0 0.0
        %418 = vmatpush1.msra.mxu0 0.0
        %419 = vmatprep.subr.mxu0 0.0
        %420 = vmatpush1.msra.mxu0 0.0
        %421 = vmatprep.subr.mxu0 0.0
        %422 = vmatpush1.msra.mxu0 0.0
        %423 = vmatprep.subr.mxu0 0.0
        %424 = vmatpush1.msra.mxu0 0.0
        %425 = vmatprep.subr.mxu0 0.0
        %426 = vmatpush1.msra.mxu0 0.0
        %427 = vmatprep.subr.mxu0 0.0
        %428 = vmatpush1.msra.mxu0 0.0
        %429 = vmatprep.subr.mxu0 0.0
        %430 = vmatpush1.msra.mxu0 0.0
        %431 = vmatprep.subr.mxu0 0.0
        %432 = vmatpush1.msra.mxu0 0.0
        %433 = vmatprep.subr.mxu0 0.0
        %434 = vmatpush1.msra.mxu0 0.0
        %435 = vmatprep.subr.mxu0 0.0
        %436 = vmatpush1.msra.mxu0 0.0
        %437 = vmatprep.subr.mxu0 0.0
        %438 = vmatpush1.msra.mxu0 0.0
        %439 = vmatprep.subr.mxu0 0.0
        %440 = vmatpush1.msra.mxu0 0.0
        %441 = vmatprep.subr.mxu0 0.0
        %442 = vmatpush1.msra.mxu0 0.0
        %443 = vmatprep.subr.mxu0 0.0
        %444 = vmatpush1.msra.mxu0 %v411
        %445 = vmatprep.subr.mxu0 0.0
        %446 = vmatpush2.msra.mxu0 0.0
        %447 = vmatprep.subr.mxu0 0.0
        %448 = vmatpush2.msra.mxu0 0.0
        %449 = vmatprep.subr.mxu0 0.0
        %450 = vmatpush2.msra.mxu0 0.0
        %451 = vmatprep.subr.mxu0 0.0
        %452 = vmatpush2.msra.mxu0 0.0
        %453 = vmatprep.subr.mxu0 0.0
        %454 = vmatpush2.msra.mxu0 0.0
        %455 = vmatprep.subr.mxu0 0.0
        %456 = vmatpush2.msra.mxu0 0.0
        %457 = vmatprep.subr.mxu0 0.0
        %458 = vmatpush2.msra.mxu0 0.0
        %459 = vmatprep.subr.mxu0 0.0
        %460 = vmatpush2.msra.mxu0 0.0
        %461 = vmatprep.subr.mxu0 0.0
        %462 = vmatpush2.msra.mxu0 0.0
        %463 = vmatprep.subr.mxu0 0.0
        %464 = vmatpush2.msra.mxu0 0.0
        %465 = vmatprep.subr.mxu0 0.0
        %466 = vmatpush2.msra.mxu0 0.0
        %467 = vmatprep.subr.mxu0 0.0
        %468 = vmatpush2.msra.mxu0 0.0
        %469 = vmatprep.subr.mxu0 0.0
        %470 = vmatpush2.msra.mxu0 0.0
        %471 = vmatprep.subr.mxu0 0.0
        %472 = vmatpush2.msra.mxu0 0.0
        %473 = vmatprep.subr.mxu0 0.0
        %474 = vmatpush2.msra.mxu0 0.0
        %475 = vmatprep.subr.mxu0 0.0
        %476 = vmatpush2.msra.mxu0 0.0
        %477 = vmatprep.mubr.f32.mxu0 0.0
        %478 = vmatmul.mubr.f32.gmra.mxu0 %v404
        %v479 = vpop.f32.mrf.mxu0
        %v480 = vadd.f32 %v400, %v479
        %v481 = vpop.f32.mrf.mxu0
        %482 = vmatprep.mubr.f32.mxu0 0.0
        %483 = vmatmul.mubr.f32.gmra.mxu0 %v407
        %v484 = vpop.f32.mrf.mxu0
        %v485 = vadd.f32 %v400, %v484
        %v486 = vpop.f32.mrf.mxu0
        %487 = vdwg.mxu0
        %v489 = vcombine.high %v395, %v395
        %v491 = vunpack.c.l.s4 1966171168
        %v492 = vunpack.c.0.s8 %v491
        %v493 = vlaneseq
        %v494 = vshrl.u32 %v493, 7
        %v495 = vsub.s32 %v492, %v494
        %v496 = vrot.slane %v395, %v495
        %v498 = vunpack.c.l.s4 1966171168
        %v499 = vunpack.c.0.s8 %v498
        %v500 = vlaneseq
        %v501 = vshrl.u32 %v500, 7
        %v502 = vsub.s32 %v499, %v501
        %v503 = vrot.slane %v489, %v502
        %v504 = vcombine.high %v496, %v496
        %v505 = vcombine.high %v503, %v503
        %v507 = vunpack.c.l.s4 1966171168
        %v508 = vunpack.c.0.s8 %v507
        %v509 = vlaneseq
        %v510 = vshrl.u32 %v509, 7
        %v511 = vsub.s32 %v508, %v510
        %v512 = vrot.slane %v496, %v511
        %v514 = vunpack.c.l.s4 1966171168
        %v515 = vunpack.c.0.s8 %v514
        %v516 = vlaneseq
        %v517 = vshrl.u32 %v516, 7
        %v518 = vsub.s32 %v515, %v517
        %v519 = vrot.slane %v503, %v518
        %v521 = vunpack.c.l.s4 1966171168
        %v522 = vunpack.c.0.s8 %v521
        %v523 = vlaneseq
        %v524 = vshrl.u32 %v523, 7
        %v525 = vsub.s32 %v522, %v524
        %v526 = vrot.slane %v504, %v525
        %v528 = vunpack.c.l.s4 1966171168
        %v529 = vunpack.c.0.s8 %v528
        %v530 = vlaneseq
        %v531 = vshrl.u32 %v530, 7
        %v532 = vsub.s32 %v529, %v531
        %v533 = vrot.slane %v505, %v532
        %v534 = vcombine.high %v512, %v512
        %v535 = vcombine.high %v519, %v519
        %v536 = vcombine.high %v526, %v526
        %v537 = vcombine.high %v533, %v533
        %v538 = vlaneseq
        %v539 = vshrl.u32 %v538, 7
        %v540 = vsub.s32 0, %v539
        %v541 = vrot.slane %v512, %v540
        %v542 = vlaneseq
        %v543 = vshrl.u32 %v542, 7
        %v544 = vsub.s32 0, %v543
        %v545 = vrot.slane %v526, %v544
        %v546 = vlaneseq
        %v547 = vshrl.u32 %v546, 7
        %v548 = vsub.s32 0, %v547
        %v549 = vrot.slane %v534, %v548
        %v550 = vlaneseq
        %v551 = vshrl.u32 %v550, 7
        %v552 = vsub.s32 0, %v551
        %v553 = vrot.slane %v536, %v552
        %v554 = vlaneseq
        %v555 = vshrl.u32 %v554, 7
        %v556 = vsub.s32 0, %v555
        %v557 = vrot.slane %v519, %v556
        %v558 = vlaneseq
        %v559 = vshrl.u32 %v558, 7
        %v560 = vsub.s32 0, %v559
        %v561 = vrot.slane %v533, %v560
        %v562 = vlaneseq
        %v563 = vshrl.u32 %v562, 7
        %v564 = vsub.s32 0, %v563
        %v565 = vrot.slane %v535, %v564
        %v566 = vlaneseq
        %v567 = vshrl.u32 %v566, 7
        %v568 = vsub.s32 0, %v567
        %v569 = vrot.slane %v537, %v568
        %v578 = vadd.f32 %v480, %v541
        %v579 = vadd.f32 %v485, %v541
        %v580 = vadd.f32 %v480, %v545
        %v581 = vadd.f32 %v485, %v545
        %v582 = vadd.f32 %v480, %v549
        %v583 = vadd.f32 %v485, %v549
        %v584 = vadd.f32 %v480, %v553
        %v585 = vadd.f32 %v485, %v553
        %v586 = vadd.f32 %v480, %v557
        %v587 = vadd.f32 %v485, %v557
        %v588 = vadd.f32 %v480, %v561
        %v589 = vadd.f32 %v485, %v561
        %v590 = vadd.f32 %v480, %v565
        %v591 = vadd.f32 %v485, %v565
        %v592 = vadd.f32 %v480, %v569
        %v593 = vadd.f32 %v485, %v569
        %v594 = vmax.f32 %v578, 0.0
        %v595 = vmax.f32 %v579, 0.0
        %v596 = vmax.f32 %v580, 0.0
        %v597 = vmax.f32 %v581, 0.0
        %v598 = vmax.f32 %v582, 0.0
        %v599 = vmax.f32 %v583, 0.0
        %v600 = vmax.f32 %v584, 0.0
        %v601 = vmax.f32 %v585, 0.0
        %v602 = vmax.f32 %v586, 0.0
        %v603 = vmax.f32 %v587, 0.0
        %v604 = vmax.f32 %v588, 0.0
        %v605 = vmax.f32 %v589, 0.0
        %v606 = vmax.f32 %v590, 0.0
        %v607 = vmax.f32 %v591, 0.0
        %v608 = vmax.f32 %v592, 0.0
        %v609 = vmax.f32 %v593, 0.0
        %v611 = vlaneseq
        %v612 = vshrl.u32 %v611, 7
        %v613 = vsub.s32 0, %v612
        %v614 = vrot.slane %v389, %v613
        %v616 = vmul.f32 %v594, %v614
        %v617 = vmul.f32 %v595, %v614
        %v618 = vmul.f32 %v596, %v614
        %v619 = vmul.f32 %v597, %v614
        %v620 = vmul.f32 %v598, %v614
        %v621 = vmul.f32 %v599, %v614
        %v622 = vmul.f32 %v600, %v614
        %v623 = vmul.f32 %v601, %v614
        %v624 = vmul.f32 %v602, %v614
        %v625 = vmul.f32 %v603, %v614
        %v626 = vmul.f32 %v604, %v614
        %v627 = vmul.f32 %v605, %v614
        %v628 = vmul.f32 %v606, %v614
        %v629 = vmul.f32 %v607, %v614
        %v630 = vmul.f32 %v608, %v614
        %v631 = vmul.f32 %v609, %v614
        %vm632 = vcmask 261120
        %v633 = vsel %vm632, %v616, 0.0
        %634 = vadd.xlane.f32.xlu0 %v633
        %v635 = vpop.xlane.xlu0 %634
        %v636 = vsel %vm632, %v617, 0.0
        %637 = vadd.xlane.f32.xlu0 %v636
        %v638 = vpop.xlane.xlu0 %637
        %v639 = vsel %vm632, %v618, 0.0
        %640 = vadd.xlane.f32.xlu0 %v639
        %v641 = vpop.xlane.xlu0 %640
        %v642 = vsel %vm632, %v619, 0.0
        %643 = vadd.xlane.f32.xlu0 %v642
        %v644 = vpop.xlane.xlu0 %643
        %v645 = vsel %vm632, %v620, 0.0
        %646 = vadd.xlane.f32.xlu0 %v645
        %v647 = vpop.xlane.xlu0 %646
        %v648 = vsel %vm632, %v621, 0.0
        %649 = vadd.xlane.f32.xlu0 %v648
        %v650 = vpop.xlane.xlu0 %649
        %v651 = vsel %vm632, %v622, 0.0
        %652 = vadd.xlane.f32.xlu0 %v651
        %v653 = vpop.xlane.xlu0 %652
        %v654 = vsel %vm632, %v623, 0.0
        %655 = vadd.xlane.f32.xlu0 %v654
        %v656 = vpop.xlane.xlu0 %655
        %v657 = vsel %vm632, %v624, 0.0
        %658 = vadd.xlane.f32.xlu0 %v657
        %v659 = vpop.xlane.xlu0 %658
        %v660 = vsel %vm632, %v625, 0.0
        %661 = vadd.xlane.f32.xlu0 %v660
        %v662 = vpop.xlane.xlu0 %661
        %v663 = vsel %vm632, %v626, 0.0
        %664 = vadd.xlane.f32.xlu0 %v663
        %v665 = vpop.xlane.xlu0 %664
        %v666 = vsel %vm632, %v627, 0.0
        %667 = vadd.xlane.f32.xlu0 %v666
        %v668 = vpop.xlane.xlu0 %667
        %v669 = vsel %vm632, %v628, 0.0
        %670 = vadd.xlane.f32.xlu0 %v669
        %v671 = vpop.xlane.xlu0 %670
        %v672 = vsel %vm632, %v629, 0.0
        %673 = vadd.xlane.f32.xlu0 %v672
        %v674 = vpop.xlane.xlu0 %673
        %v675 = vsel %vm632, %v630, 0.0
        %676 = vadd.xlane.f32.xlu0 %v675
        %v677 = vpop.xlane.xlu0 %676
        %v678 = vsel %vm632, %v631, 0.0
        %679 = vadd.xlane.f32.xlu0 %v678
        %v680 = vpop.xlane.xlu0 %679
        %v681 = vstv %s390
        %v682 = vadd.f32 %v635, %v681
        %v683 = vadd.f32 %v638, %v681
        %v684 = vadd.f32 %v641, %v681
        %v685 = vadd.f32 %v644, %v681
        %v686 = vadd.f32 %v647, %v681
        %v687 = vadd.f32 %v650, %v681
        %v688 = vadd.f32 %v653, %v681
        %v689 = vadd.f32 %v656, %v681
        %v690 = vadd.f32 %v659, %v681
        %v691 = vadd.f32 %v662, %v681
        %v692 = vadd.f32 %v665, %v681
        %v693 = vadd.f32 %v668, %v681
        %v694 = vadd.f32 %v671, %v681
        %v695 = vadd.f32 %v674, %v681
        %v696 = vadd.f32 %v677, %v681
        %v697 = vadd.f32 %v680, %v681
        %v714 = vlaneseq
        %v715 = vand.u32 %v714, 127
        %v716 = vlaneseq
        %v717 = vshrl.u32 %v716, 7
        %v718 = vsub.s32 %v715, %v717
        %v719 = vrot.slane %v682, %v718
        %v720 = vadd.s32 %v715, 4294967288
        %v721 = vlaneseq
        %v722 = vshrl.u32 %v721, 7
        %v723 = vsub.s32 %v720, %v722
        %v724 = vrot.slane %v683, %v723
        %vm725 = vcmask 130112
        %v726 = vsel %vm725, %v724, %v719
        %v727 = vlaneseq
        %v728 = vshrl.u32 %v727, 7
        %v729 = vsub.s32 %v715, %v728
        %v730 = vrot.slane %v684, %v729
        %v731 = vlaneseq
        %v732 = vshrl.u32 %v731, 7
        %v733 = vsub.s32 %v720, %v732
        %v734 = vrot.slane %v685, %v733
        %v735 = vsel %vm725, %v734, %v730
        %v736 = vlaneseq
        %v737 = vshrl.u32 %v736, 7
        %v738 = vsub.s32 %v715, %v737
        %v739 = vrot.slane %v686, %v738
        %v740 = vlaneseq
        %v741 = vshrl.u32 %v740, 7
        %v742 = vsub.s32 %v720, %v741
        %v743 = vrot.slane %v687, %v742
        %v744 = vsel %vm725, %v743, %v739
        %v745 = vlaneseq
        %v746 = vshrl.u32 %v745, 7
        %v747 = vsub.s32 %v715, %v746
        %v748 = vrot.slane %v688, %v747
        %v749 = vlaneseq
        %v750 = vshrl.u32 %v749, 7
        %v751 = vsub.s32 %v720, %v750
        %v752 = vrot.slane %v689, %v751
        %v753 = vsel %vm725, %v752, %v748
        %v754 = vlaneseq
        %v755 = vshrl.u32 %v754, 7
        %v756 = vsub.s32 %v715, %v755
        %v757 = vrot.slane %v690, %v756
        %v758 = vlaneseq
        %v759 = vshrl.u32 %v758, 7
        %v760 = vsub.s32 %v720, %v759
        %v761 = vrot.slane %v691, %v760
        %v762 = vsel %vm725, %v761, %v757
        %v763 = vlaneseq
        %v764 = vshrl.u32 %v763, 7
        %v765 = vsub.s32 %v715, %v764
        %v766 = vrot.slane %v692, %v765
        %v767 = vlaneseq
        %v768 = vshrl.u32 %v767, 7
        %v769 = vsub.s32 %v720, %v768
        %v770 = vrot.slane %v693, %v769
        %v771 = vsel %vm725, %v770, %v766
        %v772 = vlaneseq
        %v773 = vshrl.u32 %v772, 7
        %v774 = vsub.s32 %v715, %v773
        %v775 = vrot.slane %v694, %v774
        %v776 = vlaneseq
        %v777 = vshrl.u32 %v776, 7
        %v778 = vsub.s32 %v720, %v777
        %v779 = vrot.slane %v695, %v778
        %v780 = vsel %vm725, %v779, %v775
        %v781 = vlaneseq
        %v782 = vshrl.u32 %v781, 7
        %v783 = vsub.s32 %v715, %v782
        %v784 = vrot.slane %v696, %v783
        %v785 = vlaneseq
        %v786 = vshrl.u32 %v785, 7
        %v787 = vsub.s32 %v720, %v786
        %v788 = vrot.slane %v697, %v787
        %v789 = vsel %vm725, %v788, %v784
        %vm790 = vcmask 1041409
        %v791 = vsel %vm790, %v735, %v726
        %vm792 = vcmask 1042434
        %v793 = vsel %vm792, %v744, %v791
        %vm794 = vcmask 1043459
        %v795 = vsel %vm794, %v753, %v793
        %vm796 = vcmask 1044484
        %v797 = vsel %vm796, %v762, %v795
        %vm798 = vcmask 1045509
        %v799 = vsel %vm798, %v771, %v797
        %vm800 = vcmask 1046534
        %v801 = vsel %vm800, %v780, %v799
        %vm802 = vcmask 1047559
        %v803 = vsel %vm802, %v789, %v801
        %vm805 = vcmask 130048
        %v806 = vsel %vm805, %v803, -inf
        %807 = vmax.xlane.f32.xlu0 %v806
        %v808 = vpop.xlane.xlu0 %807
        %v810 = vlaneseq
        %v811 = vshrl.u32 %v810, 7
        %v812 = vsub.s32 0, %v811
        %v813 = vrot.slane %v808, %v812
        %v814 = vlaneseq
        %v815 = vshrl.u32 %v814, 7
        %v816 = vsub.s32 1, %v815
        %v817 = vrot.slane %v808, %v816
        %v818 = vlaneseq
        %v819 = vshrl.u32 %v818, 7
        %v820 = vsub.s32 2, %v819
        %v821 = vrot.slane %v808, %v820
        %v822 = vlaneseq
        %v823 = vshrl.u32 %v822, 7
        %v824 = vsub.s32 3, %v823
        %v825 = vrot.slane %v808, %v824
        %v826 = vlaneseq
        %v827 = vshrl.u32 %v826, 7
        %v828 = vsub.s32 4, %v827
        %v829 = vrot.slane %v808, %v828
        %v830 = vlaneseq
        %v831 = vshrl.u32 %v830, 7
        %v832 = vsub.s32 5, %v831
        %v833 = vrot.slane %v808, %v832
        %v834 = vlaneseq
        %v835 = vshrl.u32 %v834, 7
        %v836 = vsub.s32 6, %v835
        %v837 = vrot.slane %v808, %v836
        %v838 = vlaneseq
        %v839 = vshrl.u32 %v838, 7
        %v840 = vsub.s32 7, %v839
        %v841 = vrot.slane %v808, %v840
        %v850 = vsub.f32 %v682, %v813
        %v851 = vsub.f32 %v683, %v813
        %v852 = vsub.f32 %v684, %v817
        %v853 = vsub.f32 %v685, %v817
        %v854 = vsub.f32 %v686, %v821
        %v855 = vsub.f32 %v687, %v821
        %v856 = vsub.f32 %v688, %v825
        %v857 = vsub.f32 %v689, %v825
        %v858 = vsub.f32 %v690, %v829
        %v859 = vsub.f32 %v691, %v829
        %v860 = vsub.f32 %v692, %v833
        %v861 = vsub.f32 %v693, %v833
        %v862 = vsub.f32 %v694, %v837
        %v863 = vsub.f32 %v695, %v837
        %v864 = vsub.f32 %v696, %v841
        %v865 = vsub.f32 %v697, %v841
        %v866 = vmul.f32 %v850, 1.442695
        %v867 = vpow.pop %v866
        %v868 = vmul.f32 %v851, 1.442695
        %v869 = vpow.pop %v868
        %v870 = vmul.f32 %v852, 1.442695
        %v871 = vpow.pop %v870
        %v872 = vmul.f32 %v853, 1.442695
        %v873 = vpow.pop %v872
        %v874 = vmul.f32 %v854, 1.442695
        %v875 = vpow.pop %v874
        %v876 = vmul.f32 %v855, 1.442695
        %v877 = vpow.pop %v876
        %v878 = vmul.f32 %v856, 1.442695
        %v879 = vpow.pop %v878
        %v880 = vmul.f32 %v857, 1.442695
        %v881 = vpow.pop %v880
        %v882 = vmul.f32 %v858, 1.442695
        %v883 = vpow.pop %v882
        %v884 = vmul.f32 %v859, 1.442695
        %v885 = vpow.pop %v884
        %v886 = vmul.f32 %v860, 1.442695
        %v887 = vpow.pop %v886
        %v888 = vmul.f32 %v861, 1.442695
        %v889 = vpow.pop %v888
        %v890 = vmul.f32 %v862, 1.442695
        %v891 = vpow.pop %v890
        %v892 = vmul.f32 %v863, 1.442695
        %v893 = vpow.pop %v892
        %v894 = vmul.f32 %v864, 1.442695
        %v895 = vpow.pop %v894
        %v896 = vmul.f32 %v865, 1.442695
        %v897 = vpow.pop %v896
        %914 = vset.pattern.permute.xlu0 0
        %915 = vperm.xlu0 %914, %v867
        %v916 = vpop.permute.xlu0 %915
        %917 = vset.pattern.permute.xlu0 0
        %918 = vperm.xlu0 %917, %v869
        %v919 = vpop.permute.xlu0 %918
        %920 = vset.pattern.permute.xlu0 0
        %921 = vperm.xlu0 %920, %v871
        %v922 = vpop.permute.xlu0 %921
        %923 = vset.pattern.permute.xlu0 0
        %924 = vperm.xlu0 %923, %v873
        %v925 = vpop.permute.xlu0 %924
        %926 = vset.pattern.permute.xlu0 0
        %927 = vperm.xlu0 %926, %v875
        %v928 = vpop.permute.xlu0 %927
        %929 = vset.pattern.permute.xlu0 0
        %930 = vperm.xlu0 %929, %v877
        %v931 = vpop.permute.xlu0 %930
        %932 = vset.pattern.permute.xlu0 0
        %933 = vperm.xlu0 %932, %v879
        %v934 = vpop.permute.xlu0 %933
        %935 = vset.pattern.permute.xlu0 0
        %936 = vperm.xlu0 %935, %v881
        %v937 = vpop.permute.xlu0 %936
        %938 = vset.pattern.permute.xlu0 0
        %939 = vperm.xlu0 %938, %v883
        %v940 = vpop.permute.xlu0 %939
        %941 = vset.pattern.permute.xlu0 0
        %942 = vperm.xlu0 %941, %v885
        %v943 = vpop.permute.xlu0 %942
        %944 = vset.pattern.permute.xlu0 0
        %945 = vperm.xlu0 %944, %v887
        %v946 = vpop.permute.xlu0 %945
        %947 = vset.pattern.permute.xlu0 0
        %948 = vperm.xlu0 %947, %v889
        %v949 = vpop.permute.xlu0 %948
        %950 = vset.pattern.permute.xlu0 0
        %951 = vperm.xlu0 %950, %v891
        %v952 = vpop.permute.xlu0 %951
        %953 = vset.pattern.permute.xlu0 0
        %954 = vperm.xlu0 %953, %v893
        %v955 = vpop.permute.xlu0 %954
        %956 = vset.pattern.permute.xlu0 0
        %957 = vperm.xlu0 %956, %v895
        %v958 = vpop.permute.xlu0 %957
        %959 = vset.pattern.permute.xlu0 0
        %960 = vperm.xlu0 %959, %v897
        %v961 = vpop.permute.xlu0 %960
        %v962 = vlaneseq
        %v963 = vshrl.u32 %v962, 7
        %v964 = vsub.s32 %v715, %v963
        %v965 = vrot.slane %v916, %v964
        %v966 = vlaneseq
        %v967 = vshrl.u32 %v966, 7
        %v968 = vsub.s32 %v720, %v967
        %v969 = vrot.slane %v919, %v968
        %v970 = vsel %vm725, %v969, %v965
        %v971 = vlaneseq
        %v972 = vshrl.u32 %v971, 7
        %v973 = vsub.s32 %v715, %v972
        %v974 = vrot.slane %v922, %v973
        %v975 = vlaneseq
        %v976 = vshrl.u32 %v975, 7
        %v977 = vsub.s32 %v720, %v976
        %v978 = vrot.slane %v925, %v977
        %v979 = vsel %vm725, %v978, %v974
        %v980 = vlaneseq
        %v981 = vshrl.u32 %v980, 7
        %v982 = vsub.s32 %v715, %v981
        %v983 = vrot.slane %v928, %v982
        %v984 = vlaneseq
        %v985 = vshrl.u32 %v984, 7
        %v986 = vsub.s32 %v720, %v985
        %v987 = vrot.slane %v931, %v986
        %v988 = vsel %vm725, %v987, %v983
        %v989 = vlaneseq
        %v990 = vshrl.u32 %v989, 7
        %v991 = vsub.s32 %v715, %v990
        %v992 = vrot.slane %v934, %v991
        %v993 = vlaneseq
        %v994 = vshrl.u32 %v993, 7
        %v995 = vsub.s32 %v720, %v994
        %v996 = vrot.slane %v937, %v995
        %v997 = vsel %vm725, %v996, %v992
        %v998 = vlaneseq
        %v999 = vshrl.u32 %v998, 7
        %v1000 = vsub.s32 %v715, %v999
        %v1001 = vrot.slane %v940, %v1000
        %v1002 = vlaneseq
        %v1003 = vshrl.u32 %v1002, 7
        %v1004 = vsub.s32 %v720, %v1003
        %v1005 = vrot.slane %v943, %v1004
        %v1006 = vsel %vm725, %v1005, %v1001
        %v1007 = vlaneseq
        %v1008 = vshrl.u32 %v1007, 7
        %v1009 = vsub.s32 %v715, %v1008
        %v1010 = vrot.slane %v946, %v1009
        %v1011 = vlaneseq
        %v1012 = vshrl.u32 %v1011, 7
        %v1013 = vsub.s32 %v720, %v1012
        %v1014 = vrot.slane %v949, %v1013
        %v1015 = vsel %vm725, %v1014, %v1010
        %v1016 = vlaneseq
        %v1017 = vshrl.u32 %v1016, 7
        %v1018 = vsub.s32 %v715, %v1017
        %v1019 = vrot.slane %v952, %v1018
        %v1020 = vlaneseq
        %v1021 = vshrl.u32 %v1020, 7
        %v1022 = vsub.s32 %v720, %v1021
        %v1023 = vrot.slane %v955, %v1022
        %v1024 = vsel %vm725, %v1023, %v1019
        %v1025 = vlaneseq
        %v1026 = vshrl.u32 %v1025, 7
        %v1027 = vsub.s32 %v715, %v1026
        %v1028 = vrot.slane %v958, %v1027
        %v1029 = vlaneseq
        %v1030 = vshrl.u32 %v1029, 7
        %v1031 = vsub.s32 %v720, %v1030
        %v1032 = vrot.slane %v961, %v1031
        %v1033 = vsel %vm725, %v1032, %v1028
        %v1034 = vsel %vm790, %v979, %v970
        %v1035 = vsel %vm792, %v988, %v1034
        %v1036 = vsel %vm794, %v997, %v1035
        %v1037 = vsel %vm796, %v1006, %v1036
        %v1038 = vsel %vm798, %v1015, %v1037
        %v1039 = vsel %vm800, %v1024, %v1038
        %v1040 = vsel %vm802, %v1033, %v1039
        %v1042 = vsel %vm805, %v1040, 0.0
        %1043 = vadd.xlane.f32.xlu0 %v1042
        %v1044 = vpop.xlane.xlu0 %1043
        %v1045 = vsel %vm805, %v1040, 0
        %1047 = vmatprep.subr.mxu0 0.0
        %1048 = vmatpush1.msra.mxu0 0.0
        %1049 = vmatprep.subr.mxu0 0.0
        %1050 = vmatpush1.msra.mxu0 0.0
        %1051 = vmatprep.subr.mxu0 0.0
        %1052 = vmatpush1.msra.mxu0 0.0
        %1053 = vmatprep.subr.mxu0 0.0
        %1054 = vmatpush1.msra.mxu0 0.0
        %1055 = vmatprep.subr.mxu0 0.0
        %1056 = vmatpush1.msra.mxu0 0.0
        %1057 = vmatprep.subr.mxu0 0.0
        %1058 = vmatpush1.msra.mxu0 0.0
        %1059 = vmatprep.subr.mxu0 0.0
        %1060 = vmatpush1.msra.mxu0 0.0
        %1061 = vmatprep.subr.mxu0 0.0
        %1062 = vmatpush1.msra.mxu0 0.0
        %1063 = vmatprep.subr.mxu0 0.0
        %1064 = vmatpush1.msra.mxu0 0.0
        %1065 = vmatprep.subr.mxu0 0.0
        %1066 = vmatpush1.msra.mxu0 0.0
        %1067 = vmatprep.subr.mxu0 0.0
        %1068 = vmatpush1.msra.mxu0 0.0
        %1069 = vmatprep.subr.mxu0 0.0
        %1070 = vmatpush1.msra.mxu0 0.0
        %1071 = vmatprep.subr.mxu0 0.0
        %1072 = vmatpush1.msra.mxu0 0.0
        %1073 = vmatprep.subr.mxu0 0.0
        %1074 = vmatpush1.msra.mxu0 0.0
        %1075 = vmatprep.subr.mxu0 0.0
        %1076 = vmatpush1.msra.mxu0 %v394
        %1077 = vmatprep.subr.mxu0 0.0
        %1078 = vmatpush1.msra.mxu0 %v393
        %1079 = vmatprep.subr.mxu0 0.0
        %1080 = vmatpush2.msra.mxu0 0.0
        %1081 = vmatprep.subr.mxu0 0.0
        %1082 = vmatpush2.msra.mxu0 0.0
        %1083 = vmatprep.subr.mxu0 0.0
        %1084 = vmatpush2.msra.mxu0 0.0
        %1085 = vmatprep.subr.mxu0 0.0
        %1086 = vmatpush2.msra.mxu0 0.0
        %1087 = vmatprep.subr.mxu0 0.0
        %1088 = vmatpush2.msra.mxu0 0.0
        %1089 = vmatprep.subr.mxu0 0.0
        %1090 = vmatpush2.msra.mxu0 0.0
        %1091 = vmatprep.subr.mxu0 0.0
        %1092 = vmatpush2.msra.mxu0 0.0
        %1093 = vmatprep.subr.mxu0 0.0
        %1094 = vmatpush2.msra.mxu0 0.0
        %1095 = vmatprep.subr.mxu0 0.0
        %1096 = vmatpush2.msra.mxu0 0.0
        %1097 = vmatprep.subr.mxu0 0.0
        %1098 = vmatpush2.msra.mxu0 0.0
        %1099 = vmatprep.subr.mxu0 0.0
        %1100 = vmatpush2.msra.mxu0 0.0
        %1101 = vmatprep.subr.mxu0 0.0
        %1102 = vmatpush2.msra.mxu0 0.0
        %1103 = vmatprep.subr.mxu0 0.0
        %1104 = vmatpush2.msra.mxu0 0.0
        %1105 = vmatprep.subr.mxu0 0.0
        %1106 = vmatpush2.msra.mxu0 0.0
        %1107 = vmatprep.subr.mxu0 0.0
        %1108 = vmatpush2.msra.mxu0 0.0
        %1109 = vmatprep.subr.mxu0 0.0
        %1110 = vmatpush2.msra.mxu0 0.0
        %1111 = vmatprep.mubr.f32.mxu0 0.0
        %1112 = vmatmul.mubr.f32.gmra.mxu0 %v1045
        %v1113 = vpop.f32.mrf.mxu0
        %v1114 = vadd.f32 0.0, %v1113
        %v1115 = vpop.f32.mrf.mxu0
        %1116 = vdwg.mxu0
        %v1117 = vrcp.pop %v1044
        %v1118 = vmul.f32 %v1114, %v1117
        %v1120 = vlaneseq
        %v1121 = vshrl.u32 %v1120, 7
        %v1122 = vsub.s32 0, %v1121
        %v1123 = vrot.slane %v392, %v1122
        %v1126 = vsel %vm402, %v1118, 0
        %v1129 = vsel %vm409, %v391, 0
        %1131 = vmatprep.subr.mxu0 0.0
        %1132 = vmatpush1.msra.mxu0 0.0
        %1133 = vmatprep.subr.mxu0 0.0
        %1134 = vmatpush1.msra.mxu0 0.0
        %1135 = vmatprep.subr.mxu0 0.0
        %1136 = vmatpush1.msra.mxu0 0.0
        %1137 = vmatprep.subr.mxu0 0.0
        %1138 = vmatpush1.msra.mxu0 0.0
        %1139 = vmatprep.subr.mxu0 0.0
        %1140 = vmatpush1.msra.mxu0 0.0
        %1141 = vmatprep.subr.mxu0 0.0
        %1142 = vmatpush1.msra.mxu0 0.0
        %1143 = vmatprep.subr.mxu0 0.0
        %1144 = vmatpush1.msra.mxu0 0.0
        %1145 = vmatprep.subr.mxu0 0.0
        %1146 = vmatpush1.msra.mxu0 0.0
        %1147 = vmatprep.subr.mxu0 0.0
        %1148 = vmatpush1.msra.mxu0 0.0
        %1149 = vmatprep.subr.mxu0 0.0
        %1150 = vmatpush1.msra.mxu0 0.0
        %1151 = vmatprep.subr.mxu0 0.0
        %1152 = vmatpush1.msra.mxu0 0.0
        %1153 = vmatprep.subr.mxu0 0.0
        %1154 = vmatpush1.msra.mxu0 0.0
        %1155 = vmatprep.subr.mxu0 0.0
        %1156 = vmatpush1.msra.mxu0 0.0
        %1157 = vmatprep.subr.mxu0 0.0
        %1158 = vmatpush1.msra.mxu0 0.0
        %1159 = vmatprep.subr.mxu0 0.0
        %1160 = vmatpush1.msra.mxu0 0.0
        %1161 = vmatprep.subr.mxu0 0.0
        %1162 = vmatpush1.msra.mxu0 %v1129
        %1163 = vmatprep.subr.mxu0 0.0
        %1164 = vmatpush2.msra.mxu0 0.0
        %1165 = vmatprep.subr.mxu0 0.0
        %1166 = vmatpush2.msra.mxu0 0.0
        %1167 = vmatprep.subr.mxu0 0.0
        %1168 = vmatpush2.msra.mxu0 0.0
        %1169 = vmatprep.subr.mxu0 0.0
        %1170 = vmatpush2.msra.mxu0 0.0
        %1171 = vmatprep.subr.mxu0 0.0
        %1172 = vmatpush2.msra.mxu0 0.0
        %1173 = vmatprep.subr.mxu0 0.0
        %1174 = vmatpush2.msra.mxu0 0.0
        %1175 = vmatprep.subr.mxu0 0.0
        %1176 = vmatpush2.msra.mxu0 0.0
        %1177 = vmatprep.subr.mxu0 0.0
        %1178 = vmatpush2.msra.mxu0 0.0
        %1179 = vmatprep.subr.mxu0 0.0
        %1180 = vmatpush2.msra.mxu0 0.0
        %1181 = vmatprep.subr.mxu0 0.0
        %1182 = vmatpush2.msra.mxu0 0.0
        %1183 = vmatprep.subr.mxu0 0.0
        %1184 = vmatpush2.msra.mxu0 0.0
        %1185 = vmatprep.subr.mxu0 0.0
        %1186 = vmatpush2.msra.mxu0 0.0
        %1187 = vmatprep.subr.mxu0 0.0
        %1188 = vmatpush2.msra.mxu0 0.0
        %1189 = vmatprep.subr.mxu0 0.0
        %1190 = vmatpush2.msra.mxu0 0.0
        %1191 = vmatprep.subr.mxu0 0.0
        %1192 = vmatpush2.msra.mxu0 0.0
        %1193 = vmatprep.subr.mxu0 0.0
        %1194 = vmatpush2.msra.mxu0 0.0
        %1195 = vmatprep.mubr.f32.mxu0 0.0
        %1196 = vmatmul.mubr.f32.gmra.mxu0 %v1126
        %v1197 = vpop.f32.mrf.mxu0
        %v1198 = vadd.f32 %v1123, %v1197
        %v1199 = vpop.f32.mrf.mxu0
        %1200 = vdwg.mxu0
        %v1201 = vadd.f32 %v1198, %v395
        %v1202 = vrcp.pop %v1044
        %v1204 = vlaneseq
        %v1205 = vshrl.u32 %v1204, 7
        %v1206 = vsub.s32 0, %v1205
        %v1207 = vrot.slane %v1202, %v1206
        %v1208 = vlaneseq
        %v1209 = vshrl.u32 %v1208, 7
        %v1210 = vsub.s32 1, %v1209
        %v1211 = vrot.slane %v1202, %v1210
        %v1212 = vlaneseq
        %v1213 = vshrl.u32 %v1212, 7
        %v1214 = vsub.s32 2, %v1213
        %v1215 = vrot.slane %v1202, %v1214
        %v1216 = vlaneseq
        %v1217 = vshrl.u32 %v1216, 7
        %v1218 = vsub.s32 3, %v1217
        %v1219 = vrot.slane %v1202, %v1218
        %v1220 = vlaneseq
        %v1221 = vshrl.u32 %v1220, 7
        %v1222 = vsub.s32 4, %v1221
        %v1223 = vrot.slane %v1202, %v1222
        %v1224 = vlaneseq
        %v1225 = vshrl.u32 %v1224, 7
        %v1226 = vsub.s32 5, %v1225
        %v1227 = vrot.slane %v1202, %v1226
        %v1228 = vlaneseq
        %v1229 = vshrl.u32 %v1228, 7
        %v1230 = vsub.s32 6, %v1229
        %v1231 = vrot.slane %v1202, %v1230
        %v1232 = vlaneseq
        %v1233 = vshrl.u32 %v1232, 7
        %v1234 = vsub.s32 7, %v1233
        %v1235 = vrot.slane %v1202, %v1234
        %v1244 = vmul.f32 %v867, %v1207
        %v1245 = vmul.f32 %v869, %v1207
        %v1246 = vmul.f32 %v871, %v1211
        %v1247 = vmul.f32 %v873, %v1211
        %v1248 = vmul.f32 %v875, %v1215
        %v1249 = vmul.f32 %v877, %v1215
        %v1250 = vmul.f32 %v879, %v1219
        %v1251 = vmul.f32 %v881, %v1219
        %v1252 = vmul.f32 %v883, %v1223
        %v1253 = vmul.f32 %v885, %v1223
        %v1254 = vmul.f32 %v887, %v1227
        %v1255 = vmul.f32 %v889, %v1227
        %v1256 = vmul.f32 %v891, %v1231
        %v1257 = vmul.f32 %v893, %v1231
        %v1258 = vmul.f32 %v895, %v1235
        %v1259 = vmul.f32 %v897, %v1235
        %1260 = vst.msk [vmem:[%s367] sm:$0xff] %vm632, %v1201
        %1277 = vset.pattern.permute.xlu0 0
        %1278 = vperm.xlu0 %1277, %v1244
        %v1279 = vpop.permute.xlu0 %1278
        %1280 = vset.pattern.permute.xlu0 0
        %1281 = vperm.xlu0 %1280, %v1245
        %v1282 = vpop.permute.xlu0 %1281
        %1283 = vset.pattern.permute.xlu0 0
        %1284 = vperm.xlu0 %1283, %v1246
        %v1285 = vpop.permute.xlu0 %1284
        %1286 = vset.pattern.permute.xlu0 0
        %1287 = vperm.xlu0 %1286, %v1247
        %v1288 = vpop.permute.xlu0 %1287
        %1289 = vset.pattern.permute.xlu0 0
        %1290 = vperm.xlu0 %1289, %v1248
        %v1291 = vpop.permute.xlu0 %1290
        %1292 = vset.pattern.permute.xlu0 0
        %1293 = vperm.xlu0 %1292, %v1249
        %v1294 = vpop.permute.xlu0 %1293
        %1295 = vset.pattern.permute.xlu0 0
        %1296 = vperm.xlu0 %1295, %v1250
        %v1297 = vpop.permute.xlu0 %1296
        %1298 = vset.pattern.permute.xlu0 0
        %1299 = vperm.xlu0 %1298, %v1251
        %v1300 = vpop.permute.xlu0 %1299
        %1301 = vset.pattern.permute.xlu0 0
        %1302 = vperm.xlu0 %1301, %v1252
        %v1303 = vpop.permute.xlu0 %1302
        %1304 = vset.pattern.permute.xlu0 0
        %1305 = vperm.xlu0 %1304, %v1253
        %v1306 = vpop.permute.xlu0 %1305
        %1307 = vset.pattern.permute.xlu0 0
        %1308 = vperm.xlu0 %1307, %v1254
        %v1309 = vpop.permute.xlu0 %1308
        %1310 = vset.pattern.permute.xlu0 0
        %1311 = vperm.xlu0 %1310, %v1255
        %v1312 = vpop.permute.xlu0 %1311
        %1313 = vset.pattern.permute.xlu0 0
        %1314 = vperm.xlu0 %1313, %v1256
        %v1315 = vpop.permute.xlu0 %1314
        %1316 = vset.pattern.permute.xlu0 0
        %1317 = vperm.xlu0 %1316, %v1257
        %v1318 = vpop.permute.xlu0 %1317
        %1319 = vset.pattern.permute.xlu0 0
        %1320 = vperm.xlu0 %1319, %v1258
        %v1321 = vpop.permute.xlu0 %1320
        %1322 = vset.pattern.permute.xlu0 0
        %1323 = vperm.xlu0 %1322, %v1259
        %v1324 = vpop.permute.xlu0 %1323
        %v1325 = vlaneseq
        %v1326 = vshrl.u32 %v1325, 7
        %v1327 = vsub.s32 %v715, %v1326
        %v1328 = vrot.slane %v1279, %v1327
        %v1329 = vlaneseq
        %v1330 = vshrl.u32 %v1329, 7
        %v1331 = vsub.s32 %v720, %v1330
        %v1332 = vrot.slane %v1282, %v1331
        %v1333 = vsel %vm725, %v1332, %v1328
        %v1334 = vlaneseq
        %v1335 = vshrl.u32 %v1334, 7
        %v1336 = vsub.s32 %v715, %v1335
        %v1337 = vrot.slane %v1285, %v1336
        %v1338 = vlaneseq
        %v1339 = vshrl.u32 %v1338, 7
        %v1340 = vsub.s32 %v720, %v1339
        %v1341 = vrot.slane %v1288, %v1340
        %v1342 = vsel %vm725, %v1341, %v1337
        %v1343 = vlaneseq
        %v1344 = vshrl.u32 %v1343, 7
        %v1345 = vsub.s32 %v715, %v1344
        %v1346 = vrot.slane %v1291, %v1345
        %v1347 = vlaneseq
        %v1348 = vshrl.u32 %v1347, 7
        %v1349 = vsub.s32 %v720, %v1348
        %v1350 = vrot.slane %v1294, %v1349
        %v1351 = vsel %vm725, %v1350, %v1346
        %v1352 = vlaneseq
        %v1353 = vshrl.u32 %v1352, 7
        %v1354 = vsub.s32 %v715, %v1353
        %v1355 = vrot.slane %v1297, %v1354
        %v1356 = vlaneseq
        %v1357 = vshrl.u32 %v1356, 7
        %v1358 = vsub.s32 %v720, %v1357
        %v1359 = vrot.slane %v1300, %v1358
        %v1360 = vsel %vm725, %v1359, %v1355
        %v1361 = vlaneseq
        %v1362 = vshrl.u32 %v1361, 7
        %v1363 = vsub.s32 %v715, %v1362
        %v1364 = vrot.slane %v1303, %v1363
        %v1365 = vlaneseq
        %v1366 = vshrl.u32 %v1365, 7
        %v1367 = vsub.s32 %v720, %v1366
        %v1368 = vrot.slane %v1306, %v1367
        %v1369 = vsel %vm725, %v1368, %v1364
        %v1370 = vlaneseq
        %v1371 = vshrl.u32 %v1370, 7
        %v1372 = vsub.s32 %v715, %v1371
        %v1373 = vrot.slane %v1309, %v1372
        %v1374 = vlaneseq
        %v1375 = vshrl.u32 %v1374, 7
        %v1376 = vsub.s32 %v720, %v1375
        %v1377 = vrot.slane %v1312, %v1376
        %v1378 = vsel %vm725, %v1377, %v1373
        %v1379 = vlaneseq
        %v1380 = vshrl.u32 %v1379, 7
        %v1381 = vsub.s32 %v715, %v1380
        %v1382 = vrot.slane %v1315, %v1381
        %v1383 = vlaneseq
        %v1384 = vshrl.u32 %v1383, 7
        %v1385 = vsub.s32 %v720, %v1384
        %v1386 = vrot.slane %v1318, %v1385
        %v1387 = vsel %vm725, %v1386, %v1382
        %v1388 = vlaneseq
        %v1389 = vshrl.u32 %v1388, 7
        %v1390 = vsub.s32 %v715, %v1389
        %v1391 = vrot.slane %v1321, %v1390
        %v1392 = vlaneseq
        %v1393 = vshrl.u32 %v1392, 7
        %v1394 = vsub.s32 %v720, %v1393
        %v1395 = vrot.slane %v1324, %v1394
        %v1396 = vsel %vm725, %v1395, %v1391
        %v1397 = vsel %vm790, %v1342, %v1333
        %v1398 = vsel %vm792, %v1351, %v1397
        %v1399 = vsel %vm794, %v1360, %v1398
        %v1400 = vsel %vm796, %v1369, %v1399
        %v1401 = vsel %vm798, %v1378, %v1400
        %v1402 = vsel %vm800, %v1387, %v1401
        %v1403 = vsel %vm802, %v1396, %v1402
        %1405 = vst.msk [vmem:[%s374] sm:$0xff] %vm805, %v1403
        %s1406 = sand.u32 %s230, 1
        %s1407 = scalar_lea.sflag [#allocation4], %s1406
        %s1408 = sand.u32 %s230, 1
        %s1409 = smul.addr %s1408, 8
        %s1410 = scalar_lea.vmem [#allocation3], %s1409
        %s1411 = sand.u32 %s258, 1
        %s1412 = scalar_lea.sflag [#allocation6], %s1411
        %s1413 = sand.u32 %s258, 1
        %s1414 = smul.addr %s1413, 8
        %s1415 = scalar_lea.vmem [#allocation5], %s1414
        // Predicated region
        $region53: #{tpu_custom_call.1} parent=51 // pred_check
          %p1416 = pneg %p240
        $region54: #{tpu_custom_call.1} parent=51 // pred_check_branch
          %1418 = sbr.rel (%p1416) target = $region56
        $region55: #{tpu_custom_call.1} parent=51 // pred_region
          %s1420 = ssub.s32 128, 128
          %1421 = vsyncadd %s1407, %s1420
          %s1422 = sadd.s32 %s33, %s32
          %s1423 = smul.addr %s1422, 128
          %s1424 = scalar_lea.hbm %s8, %s1423
          %s1426 = sshll.u32 %s1410, 4
          %s1427 = int_to_ptr.vmem [resolvable:$true] %s1426
          %1429 = dma.vmem_to_hbm [thread:$0]  %s1427, 128, %s1424, %s1407
        $region56: #{tpu_custom_call.1} parent=51 // pred_fallthru
          _
        // Predicated region
        $region57: #{tpu_custom_call.1} parent=51 // pred_check
          %p1430 = pneg %p268
        $region58: #{tpu_custom_call.1} parent=51 // pred_check_branch
          %1432 = sbr.rel (%p1430) target = $region60
        $region59: #{tpu_custom_call.1} parent=51 // pred_region
          %s1434 = ssub.s32 128, 128
          %1435 = vsyncadd %s1412, %s1434
          %s1436 = sadd.s32 %s33, %s32
          %s1437 = smul.addr %s1436, 128
          %s1438 = scalar_lea.hbm %s9, %s1437
          %s1440 = sshll.u32 %s1415, 4
          %s1441 = int_to_ptr.vmem [resolvable:$true] %s1440
          %1443 = dma.vmem_to_hbm [thread:$0]  %s1441, 128, %s1438, %s1412
        $region60: #{tpu_custom_call.1} parent=51 // pred_fallthru
          _
      $region52: #{tpu_custom_call.1} parent=5 // pred_fallthru
        _
      %p1444 = scmp.le.s32.totalorder 2, %s23
      // Predicated region
      $region61: #{tpu_custom_call.1} parent=5 // pred_check
        %p1445 = pneg %p1444
      $region62: #{tpu_custom_call.1} parent=5 // pred_check_branch
        %1447 = sbr.rel (%p1445) target = $region64
      $region63: #{tpu_custom_call.1} parent=5 // pred_region
        %s1448 = ssub.s32 %s23, 2
        // Predicated region
        $region65: #{tpu_custom_call.1} parent=63 // pred_check
          %p1449 = pneg %p246
        $region66: #{tpu_custom_call.1} parent=63 // pred_check_branch
          %1451 = sbr.rel (%p1449) target = $region68
        $region67: #{tpu_custom_call.1} parent=63 // pred_region
          %s1452 = sand.u32 %s231, 1
          %s1453 = scalar_lea.sflag [#allocation4], %s1452
          %s1454 = sand.u32 %s231, 1
          %s1455 = smul.addr %s1454, 8
          %s1456 = scalar_lea.vmem [#allocation3], %s1455
          %1457 = dma.done %s1453, 128
        $region68: #{tpu_custom_call.1} parent=63 // pred_fallthru
          _
        // Predicated region
        $region69: #{tpu_custom_call.1} parent=63 // pred_check
          %p1458 = pneg %p274
        $region70: #{tpu_custom_call.1} parent=63 // pred_check_branch
          %1460 = sbr.rel (%p1458) target = $region72
        $region71: #{tpu_custom_call.1} parent=63 // pred_region
          %s1461 = sand.u32 %s259, 1
          %s1462 = scalar_lea.sflag [#allocation6], %s1461
          %s1463 = sand.u32 %s259, 1
          %s1464 = smul.addr %s1463, 8
          %s1465 = scalar_lea.vmem [#allocation5], %s1464
          %1466 = dma.done %s1462, 128
        $region72: #{tpu_custom_call.1} parent=63 // pred_fallthru
          _
      $region64: #{tpu_custom_call.1} parent=5 // pred_fallthru
        _
    $region6: #{tpu_custom_call.1} parent=1 // loop_footer
      %s27 = sadd.s32 1, %s23
    $region7: #{tpu_custom_call.1} parent=1 // loop_footer_branch
      %22 = sbr.rel target = $region3
    $region8: #{tpu_custom_call.1} parent=1 // loop_exit
      _
    %1467 = vsyncpa [#allocation4], 1
    %s1468 = scalar_lea.sflag [#allocation4], 1
    %1469 = vsyncpa %s1468, 1
    %1470 = vsyncpa [#allocation6], 1
    %s1471 = scalar_lea.sflag [#allocation6], 1
    %1472 = vsyncpa %s1471, 1

</llo_original>
